<compile_context>
chip_gen: v7x
topology: tpu7x:2x2x1
jax: 0.10.0
libtpu: 0.0.40
codegen_flags: <defaults>
</compile_context>

<pallas_src>
import functools

import jax
import jax.numpy as jnp
from jax.experimental import pallas as pl
from jax.experimental.pallas import tpu as pltpu


LANE = 128  # pad all feature dims to one full lane width


def _round_up(x, m):
    return ((x + m - 1) // m) * m


# ------------------------------ fused kernel -------------------------------- #

def _make_fused_kernel(n_layers, gs, gt, n_classes):
    """Build the fused GRADE_GC forward kernel for static sizes."""
    n_graphs = gs + gt

    def kernel(a_ref, x_ref, p_ref, wg_ref, bg_ref, w1_ref, b1_ref,
               w2_ref, b2_ref, wd_ref, bd_ref, y_ref, out_ref):
        a = a_ref[...]          # (N_pad, N_pad) block-diag normalized adjacency
        x = x_ref[...]          # (N_pad, F_pad) stacked [src; tgt] node features
        p = p_ref[...]          # (G_pad, N_pad) block-diag mean-pool matrix

        # ---- GCN stack (dropout = identity in eval mode) ----
        pooled = []
        for i in range(n_layers):
            xw = jnp.dot(x, wg_ref[i], preferred_element_type=jnp.float32)
            x = jnp.dot(a, xw, preferred_element_type=jnp.float32) + bg_ref[i]
            pooled.append(jnp.dot(p, x, preferred_element_type=jnp.float32))

        # ---- fc head: Linear -> ReLU -> Linear on last pooled features ----
        h = jnp.dot(pooled[-1], w1_ref[...], preferred_element_type=jnp.float32) + b1_ref[...]
        h = jnp.maximum(h, 0.0)
        logits = jnp.dot(h, w2_ref[...], preferred_element_type=jnp.float32) + b2_ref[...]

        g_pad, c_pad = logits.shape
        row_idx = jax.lax.broadcasted_iota(jnp.int32, (g_pad, c_pad), 0)
        col_idx = jax.lax.broadcasted_iota(jnp.int32, (g_pad, c_pad), 1)
        row_col = jax.lax.broadcasted_iota(jnp.int32, (g_pad, 1), 0)

        # ---- class loss: BCEWithLogits(logit_s, one_hot(labels_s)), mean ----
        y = y_ref[...]
        z = logits
        per = jnp.maximum(z, 0.0) - z * y + jnp.log(1.0 + jnp.exp(-jnp.abs(z)))
        cls_mask = ((row_idx < gs) & (col_idx < n_classes)).astype(jnp.float32)
        cls_sum = jnp.sum(jnp.sum(per * cls_mask, axis=1, keepdims=True),
                          axis=0, keepdims=True)
        class_loss = cls_sum / float(gs * n_classes)                # (1, 1)

        # ---- domain loss: CE(disc([pool_1 | .. | pool_L | logits]), labels) ----
        # ReverseLayerF is identity in the forward pass; the concatenation along
        # features is folded into per-block matmuls against split disc weights.
        dom = bd_ref[...]
        for i in range(n_layers):
            dom = dom + jnp.dot(pooled[i], wd_ref[i],
                                preferred_element_type=jnp.float32)
        dom = dom + jnp.dot(logits, wd_ref[n_layers],
                            preferred_element_type=jnp.float32)     # (G_pad, F_pad)

        zd = jnp.where(col_idx < 2, dom, -1e30)   # only 2 real disc classes
        m = jnp.max(zd, axis=1, keepdims=True)
        lse = m + jnp.log(jnp.sum(jnp.exp(zd - m), axis=1, keepdims=True))
        # domain labels: 0 for the first gs rows (source graphs), 1 for target.
        zl = jnp.where(row_col < gs, dom[:, 0:1], dom[:, 1:2])
        row_mask = (row_col < n_graphs).astype(jnp.float32)
        dom_sum = jnp.sum((lse - zl) * row_mask, axis=0, keepdims=True)
        domain_loss = dom_sum / float(n_graphs)                     # (1, 1)

        # ---- lane-dense (1, 128) output: [class_loss, domain_loss, 0, ...] ----
        out_col = jax.lax.broadcasted_iota(jnp.int32, (1, out_ref.shape[1]), 1)
        out_ref[...] = jnp.where(out_col == 0, class_loss,
                                 jnp.where(out_col == 1, domain_loss, 0.0))

    return kernel


# ------------------------------ forward wrapper ------------------------------ #

def grade_gc_forward(params, feats_s, adj_s, pool_s, labels_s_onehot,
                     feats_t, adj_t, pool_t, alpha=1.0):
    del alpha  # ReverseLayerF is identity in the forward pass
    f_pad = params["wg"].shape[-1]
    n_layers = params["wg"].shape[0]
    ns, nt = feats_s.shape[0], feats_t.shape[0]
    gs, gt = pool_s.shape[0], pool_t.shape[0]
    n_classes = labels_s_onehot.shape[1]

    n_pad = _round_up(ns + nt, 8)
    g_pad = _round_up(gs + gt, 8)

    # Batch source + target through shared matmuls: block-diagonal A and P,
    # row-stacked node features, all zero-padded to lane-dense widths.
    a = jnp.zeros((n_pad, n_pad), jnp.float32)
    a = a.at[:ns, :ns].set(adj_s).at[ns:ns + nt, ns:ns + nt].set(adj_t)
    x = jnp.zeros((n_pad, f_pad), jnp.float32)
    x = x.at[:ns, :feats_s.shape[1]].set(feats_s)
    x = x.at[ns:ns + nt, :feats_t.shape[1]].set(feats_t)
    p = jnp.zeros((g_pad, n_pad), jnp.float32)
    p = p.at[:gs, :ns].set(pool_s).at[gs:gs + gt, ns:ns + nt].set(pool_t)
    y = jnp.zeros((g_pad, f_pad), jnp.float32)
    y = y.at[:gs, :n_classes].set(labels_s_onehot)

    kernel = _make_fused_kernel(int(n_layers), int(gs), int(gt), int(n_classes))
    vmem = lambda: pl.BlockSpec(memory_space=pltpu.MemorySpace.VMEM)

    losses = pl.pallas_call(
        kernel,
        out_shape=jax.ShapeDtypeStruct((1, f_pad), jnp.float32),
        in_specs=[vmem() for _ in range(12)],
        out_specs=vmem(),
    )(a, x, p, params["wg"], params["bg"], params["w1"], params["b1"],
      params["w2"], params["b2"], params["wd"], params["bd"], y)

    class_loss = losses[0, 0]
    domain_loss = losses[0, 1]
    loss = class_loss + domain_loss * 0.01
    return loss, class_loss, domain_loss


# --------------------------- glue (plain JAX, setup) ------------------------- #

def build_norm_adj(edge_index, num_nodes):
    """D^{-1/2} (A + I) D^{-1/2} with symmetric (undirected) edges."""
    a = jnp.zeros((num_nodes, num_nodes), jnp.float32)
    a = a.at[edge_index[0], edge_index[1]].set(1.0)
    a = a.at[edge_index[1], edge_index[0]].set(1.0)
    a = a + jnp.eye(num_nodes, dtype=jnp.float32)
    deg = jnp.sum(a, axis=1)
    dinv = 1.0 / jnp.sqrt(deg)
    return a * dinv[:, None] * dinv[None, :]


def build_pool(batch, num_graphs):
    p = jax.nn.one_hot(batch, num_graphs, dtype=jnp.float32).T  # (G, N)
    counts = jnp.sum(p, axis=1, keepdims=True)
    return p / jnp.maximum(counts, 1.0)


def init_params(key, n_hidden, n_classes, n_layers, f_pad=LANE):
    """All weights stored zero-padded to (.., f_pad) so the kernel is shape-uniform."""
    num_keys = 3 * n_layers + 6
    ks = jax.random.split(key, num_keys)
    it = iter(ks)

    wg = jnp.zeros((n_layers, f_pad, f_pad), jnp.float32)
    bg = jnp.zeros((n_layers, 1, f_pad), jnp.float32)
    for i in range(n_layers):
        w = 0.1 * jax.random.normal(next(it), (n_hidden[i], n_hidden[i + 1]), jnp.float32)
        b = 0.05 * jax.random.normal(next(it), (1, n_hidden[i + 1]), jnp.float32)
        wg = wg.at[i, :n_hidden[i], :n_hidden[i + 1]].set(w)
        bg = bg.at[i, :, :n_hidden[i + 1]].set(b)

    w1 = jnp.zeros((f_pad, f_pad), jnp.float32).at[:n_hidden[-1], :16].set(
        0.1 * jax.random.normal(next(it), (n_hidden[-1], 16), jnp.float32))
    b1 = jnp.zeros((1, f_pad), jnp.float32).at[:, :16].set(
        0.05 * jax.random.normal(next(it), (1, 16), jnp.float32))
    w2 = jnp.zeros((f_pad, f_pad), jnp.float32).at[:16, :n_classes].set(
        0.1 * jax.random.normal(next(it), (16, n_classes), jnp.float32))
    b2 = jnp.zeros((1, f_pad), jnp.float32).at[:, :n_classes].set(
        0.05 * jax.random.normal(next(it), (1, n_classes), jnp.float32))

    # Discriminator weight split into per-feature-block rows:
    # blocks 0..L-1 act on pooled layer outputs, block L on the fc logits.
    wd = jnp.zeros((n_layers + 1, f_pad, f_pad), jnp.float32)
    for i in range(n_layers):
        wd = wd.at[i, :n_hidden[i + 1], :2].set(
            0.1 * jax.random.normal(next(it), (n_hidden[i + 1], 2), jnp.float32))
    wd = wd.at[n_layers, :n_classes, :2].set(
        0.1 * jax.random.normal(next(it), (n_classes, 2), jnp.float32))
    bd = jnp.zeros((1, f_pad), jnp.float32).at[:, :2].set(
        0.05 * jax.random.normal(next(it), (1, 2), jnp.float32))

    return {"wg": wg, "bg": bg, "w1": w1, "b1": b1,
            "w2": w2, "b2": b2, "wd": wd, "bd": bd}


# --------------------------------- main -------------------------------------- #

if __name__ == "__main__":
    key = jax.random.PRNGKey(0)
    in_feats = 16
    n_hidden = [in_feats, 32, 32]
    n_classes = 2
    n_layers = 2

    Ns, Nt = 12, 10        # nodes per domain
    Gs, Gt = 3, 3          # graphs per domain

    ks = jax.random.split(key, 8)
    feats_s = jax.random.normal(ks[0], (Ns, in_feats), jnp.float32)
    feats_t = jax.random.normal(ks[1], (Nt, in_feats), jnp.float32)
    edge_index_s = jax.random.randint(ks[2], (2, 30), 0, Ns)
    edge_index_t = jax.random.randint(ks[3], (2, 24), 0, Nt)
    batch_s = jnp.array([0] * 4 + [1] * 4 + [2] * 4, jnp.int32)
    batch_t = jnp.array([0] * 4 + [1] * 3 + [2] * 3, jnp.int32)
    labels_s = jnp.array([0, 1, 0], jnp.int32)

    adj_s = build_norm_adj(edge_index_s, Ns)
    adj_t = build_norm_adj(edge_index_t, Nt)
    pool_s = build_pool(batch_s, Gs)
    pool_t = build_pool(batch_t, Gt)
    labels_s_onehot = jax.nn.one_hot(labels_s, n_classes, dtype=jnp.float32)

    params = init_params(jax.random.PRNGKey(42), n_hidden, n_classes, n_layers)

    forward = jax.jit(grade_gc_forward)
    loss, class_loss, domain_loss = forward(
        params, feats_s, adj_s, pool_s, labels_s_onehot, feats_t, adj_t, pool_t
    )
    jax.block_until_ready((loss, class_loss, domain_loss))
    print("KERNEL_OK")
</pallas_src>

<mosaic_0001>
module attributes {stable_mosaic.version = 11 : i64} {
  func.func @kernel(%arg0: memref<24x24xf32, #tpu.memory_space<vmem>>, %arg1: memref<24x128xf32, #tpu.memory_space<vmem>>, %arg2: memref<8x24xf32, #tpu.memory_space<vmem>>, %arg3: memref<2x128x128xf32, #tpu.memory_space<vmem>>, %arg4: memref<2x1x128xf32, #tpu.memory_space<vmem>>, %arg5: memref<128x128xf32, #tpu.memory_space<vmem>>, %arg6: memref<1x128xf32, #tpu.memory_space<vmem>>, %arg7: memref<128x128xf32, #tpu.memory_space<vmem>>, %arg8: memref<1x128xf32, #tpu.memory_space<vmem>>, %arg9: memref<3x128x128xf32, #tpu.memory_space<vmem>>, %arg10: memref<1x128xf32, #tpu.memory_space<vmem>>, %arg11: memref<8x128xf32, #tpu.memory_space<vmem>>, %arg12: memref<1x128xf32, #tpu.memory_space<vmem>>) attributes {dimension_semantics = [], scalar_prefetch = 0 : i64, scratch_operands = 0 : i64, tpu.core_type = #tpu.core_type<tc>} {
    %c0 = arith.constant 0 : index
    %c0_0 = arith.constant 0 : index
    %0 = vector.load %arg0[%c0, %c0_0] : memref<24x24xf32, #tpu.memory_space<vmem>>, vector<24x24xf32>
    %c0_1 = arith.constant 0 : index
    %c0_2 = arith.constant 0 : index
    %1 = vector.load %arg1[%c0_1, %c0_2] : memref<24x128xf32, #tpu.memory_space<vmem>>, vector<24x128xf32>
    %c0_3 = arith.constant 0 : index
    %c0_4 = arith.constant 0 : index
    %2 = vector.load %arg2[%c0_3, %c0_4] : memref<8x24xf32, #tpu.memory_space<vmem>>, vector<8x24xf32>
    %c0_5 = arith.constant 0 : index
    %c0_6 = arith.constant 0 : index
    %c0_7 = arith.constant 0 : index
    %3 = vector.load %arg3[%c0_5, %c0_6, %c0_7] : memref<2x128x128xf32, #tpu.memory_space<vmem>>, vector<1x128x128xf32>
    %4 = vector.shape_cast %3 : vector<1x128x128xf32> to vector<128x128xf32>
    %cst = arith.constant dense<0.000000e+00> : vector<24x128xf32>
    %5 = tpu.matmul %1, %4, %cst {dimension_numbers = #tpu.dot_dimension_numbers<[1], [0], [0], [1], [0, 0, 1, 1], [], []>} : vector<24x128xf32>, vector<128x128xf32>, vector<24x128xf32> -> vector<24x128xf32>
    %cst_8 = arith.constant dense<0.000000e+00> : vector<24x128xf32>
    %6 = tpu.matmul %0, %5, %cst_8 {dimension_numbers = #tpu.dot_dimension_numbers<[1], [0], [0], [1], [0, 0, 1, 1], [], []>} : vector<24x24xf32>, vector<24x128xf32>, vector<24x128xf32> -> vector<24x128xf32>
    %c0_9 = arith.constant 0 : index
    %c0_10 = arith.constant 0 : index
    %c0_11 = arith.constant 0 : index
    %7 = vector.load %arg4[%c0_9, %c0_10, %c0_11] : memref<2x1x128xf32, #tpu.memory_space<vmem>>, vector<1x1x128xf32>
    %8 = vector.shape_cast %7 : vector<1x1x128xf32> to vector<1x128xf32>
    %9 = vector.broadcast %8 : vector<1x128xf32> to vector<24x128xf32>
    %10 = arith.addf %6, %9 : vector<24x128xf32>
    %cst_12 = arith.constant dense<0.000000e+00> : vector<8x128xf32>
    %11 = tpu.matmul %2, %10, %cst_12 {dimension_numbers = #tpu.dot_dimension_numbers<[1], [0], [0], [1], [0, 0, 1, 1], [], []>} : vector<8x24xf32>, vector<24x128xf32>, vector<8x128xf32> -> vector<8x128xf32>
    %c1 = arith.constant 1 : index
    %c0_13 = arith.constant 0 : index
    %c0_14 = arith.constant 0 : index
    %12 = vector.load %arg3[%c1, %c0_13, %c0_14] : memref<2x128x128xf32, #tpu.memory_space<vmem>>, vector<1x128x128xf32>
    %13 = vector.shape_cast %12 : vector<1x128x128xf32> to vector<128x128xf32>
    %cst_15 = arith.constant dense<0.000000e+00> : vector<24x128xf32>
    %14 = tpu.matmul %10, %13, %cst_15 {dimension_numbers = #tpu.dot_dimension_numbers<[1], [0], [0], [1], [0, 0, 1, 1], [], []>} : vector<24x128xf32>, vector<128x128xf32>, vector<24x128xf32> -> vector<24x128xf32>
    %cst_16 = arith.constant dense<0.000000e+00> : vector<24x128xf32>
    %15 = tpu.matmul %0, %14, %cst_16 {dimension_numbers = #tpu.dot_dimension_numbers<[1], [0], [0], [1], [0, 0, 1, 1], [], []>} : vector<24x24xf32>, vector<24x128xf32>, vector<24x128xf32> -> vector<24x128xf32>
    %c1_17 = arith.constant 1 : index
    %c0_18 = arith.constant 0 : index
    %c0_19 = arith.constant 0 : index
    %16 = vector.load %arg4[%c1_17, %c0_18, %c0_19] : memref<2x1x128xf32, #tpu.memory_space<vmem>>, vector<1x1x128xf32>
    %17 = vector.shape_cast %16 : vector<1x1x128xf32> to vector<1x128xf32>
    %18 = vector.broadcast %17 : vector<1x128xf32> to vector<24x128xf32>
    %19 = arith.addf %15, %18 : vector<24x128xf32>
    %cst_20 = arith.constant dense<0.000000e+00> : vector<8x128xf32>
    %20 = tpu.matmul %2, %19, %cst_20 {dimension_numbers = #tpu.dot_dimension_numbers<[1], [0], [0], [1], [0, 0, 1, 1], [], []>} : vector<8x24xf32>, vector<24x128xf32>, vector<8x128xf32> -> vector<8x128xf32>
    %c0_21 = arith.constant 0 : index
    %c0_22 = arith.constant 0 : index
    %21 = vector.load %arg5[%c0_21, %c0_22] : memref<128x128xf32, #tpu.memory_space<vmem>>, vector<128x128xf32>
    %cst_23 = arith.constant dense<0.000000e+00> : vector<8x128xf32>
    %22 = tpu.matmul %20, %21, %cst_23 {dimension_numbers = #tpu.dot_dimension_numbers<[1], [0], [0], [1], [0, 0, 1, 1], [], []>} : vector<8x128xf32>, vector<128x128xf32>, vector<8x128xf32> -> vector<8x128xf32>
    %c0_24 = arith.constant 0 : index
    %c0_25 = arith.constant 0 : index
    %23 = vector.load %arg6[%c0_24, %c0_25] : memref<1x128xf32, #tpu.memory_space<vmem>>, vector<1x128xf32>
    %24 = vector.broadcast %23 : vector<1x128xf32> to vector<8x128xf32>
    %25 = arith.addf %22, %24 : vector<8x128xf32>
    %cst_26 = arith.constant 0.000000e+00 : f32
    %26 = vector.broadcast %cst_26 : f32 to vector<8x128xf32>
    %27 = arith.maximumf %25, %26 : vector<8x128xf32>
    %c0_27 = arith.constant 0 : index
    %c0_28 = arith.constant 0 : index
    %28 = vector.load %arg7[%c0_27, %c0_28] : memref<128x128xf32, #tpu.memory_space<vmem>>, vector<128x128xf32>
    %cst_29 = arith.constant dense<0.000000e+00> : vector<8x128xf32>
    %29 = tpu.matmul %27, %28, %cst_29 {dimension_numbers = #tpu.dot_dimension_numbers<[1], [0], [0], [1], [0, 0, 1, 1], [], []>} : vector<8x128xf32>, vector<128x128xf32>, vector<8x128xf32> -> vector<8x128xf32>
    %c0_30 = arith.constant 0 : index
    %c0_31 = arith.constant 0 : index
    %30 = vector.load %arg8[%c0_30, %c0_31] : memref<1x128xf32, #tpu.memory_space<vmem>>, vector<1x128xf32>
    %31 = vector.broadcast %30 : vector<1x128xf32> to vector<8x128xf32>
    %32 = arith.addf %29, %31 : vector<8x128xf32>
    %33 = tpu.iota {dimensions = array<i32: 0>} : vector<8x128xi32>
    %34 = tpu.iota {dimensions = array<i32: 1>} : vector<8x128xi32>
    %35 = tpu.iota {dimensions = array<i32: 0>} : vector<8x1xi32>
    %c0_32 = arith.constant 0 : index
    %c0_33 = arith.constant 0 : index
    %36 = vector.load %arg11[%c0_32, %c0_33] : memref<8x128xf32, #tpu.memory_space<vmem>>, vector<8x128xf32>
    %cst_34 = arith.constant 0.000000e+00 : f32
    %37 = vector.broadcast %cst_34 : f32 to vector<8x128xf32>
    %38 = arith.maximumf %32, %37 : vector<8x128xf32>
    %39 = arith.mulf %32, %36 : vector<8x128xf32>
    %40 = arith.subf %38, %39 : vector<8x128xf32>
    %41 = math.absf %32 : vector<8x128xf32>
    %cst_35 = arith.constant 0.000000e+00 : f32
    %42 = vector.broadcast %cst_35 : f32 to vector<8x128xf32>
    %43 = arith.subf %42, %41 : vector<8x128xf32>
    %44 = math.exp %43 : vector<8x128xf32>
    %cst_36 = arith.constant 1.000000e+00 : f32
    %45 = vector.broadcast %cst_36 : f32 to vector<8x128xf32>
    %46 = arith.addf %45, %44 : vector<8x128xf32>
    %47 = math.log %46 : vector<8x128xf32>
    %48 = arith.addf %40, %47 : vector<8x128xf32>
    %c3_i32 = arith.constant 3 : i32
    %49 = vector.broadcast %c3_i32 : i32 to vector<8x128xi32>
    %50 = arith.cmpi slt, %33, %49 : vector<8x128xi32>
    %c2_i32 = arith.constant 2 : i32
    %51 = vector.broadcast %c2_i32 : i32 to vector<8x128xi32>
    %52 = arith.cmpi slt, %34, %51 : vector<8x128xi32>
    %53 = arith.andi %50, %52 : vector<8x128xi1>
    %54 = arith.extui %53 : vector<8x128xi1> to vector<8x128xi32>
    %55 = arith.sitofp %54 : vector<8x128xi32> to vector<8x128xf32>
    %56 = arith.mulf %48, %55 : vector<8x128xf32>
    %cst_37 = arith.constant dense<0.000000e+00> : vector<8xf32>
    %57 = vector.multi_reduction <add>, %56, %cst_37 [1] : vector<8x128xf32> to vector<8xf32>
    %58 = vector.shape_cast %57 : vector<8xf32> to vector<8x1xf32>
    %cst_38 = arith.constant dense<0.000000e+00> : vector<1xf32>
    %59 = vector.multi_reduction <add>, %58, %cst_38 [0] : vector<8x1xf32> to vector<1xf32>
    %60 = vector.shape_cast %59 : vector<1xf32> to vector<1x1xf32>
    %cst_39 = arith.constant 6.000000e+00 : f32
    %61 = vector.broadcast %cst_39 : f32 to vector<1x1xf32>
    %62 = arith.divf %60, %61 : vector<1x1xf32>
    %c0_40 = arith.constant 0 : index
    %c0_41 = arith.constant 0 : index
    %63 = vector.load %arg10[%c0_40, %c0_41] : memref<1x128xf32, #tpu.memory_space<vmem>>, vector<1x128xf32>
    %c0_42 = arith.constant 0 : index
    %c0_43 = arith.constant 0 : index
    %c0_44 = arith.constant 0 : index
    %64 = vector.load %arg9[%c0_42, %c0_43, %c0_44] : memref<3x128x128xf32, #tpu.memory_space<vmem>>, vector<1x128x128xf32>
    %65 = vector.shape_cast %64 : vector<1x128x128xf32> to vector<128x128xf32>
    %cst_45 = arith.constant dense<0.000000e+00> : vector<8x128xf32>
    %66 = tpu.matmul %11, %65, %cst_45 {dimension_numbers = #tpu.dot_dimension_numbers<[1], [0], [0], [1], [0, 0, 1, 1], [], []>} : vector<8x128xf32>, vector<128x128xf32>, vector<8x128xf32> -> vector<8x128xf32>
    %67 = vector.broadcast %63 : vector<1x128xf32> to vector<8x128xf32>
    %68 = arith.addf %67, %66 : vector<8x128xf32>
    %c1_46 = arith.constant 1 : index
    %c0_47 = arith.constant 0 : index
    %c0_48 = arith.constant 0 : index
    %69 = vector.load %arg9[%c1_46, %c0_47, %c0_48] : memref<3x128x128xf32, #tpu.memory_space<vmem>>, vector<1x128x128xf32>
    %70 = vector.shape_cast %69 : vector<1x128x128xf32> to vector<128x128xf32>
    %cst_49 = arith.constant dense<0.000000e+00> : vector<8x128xf32>
    %71 = tpu.matmul %20, %70, %cst_49 {dimension_numbers = #tpu.dot_dimension_numbers<[1], [0], [0], [1], [0, 0, 1, 1], [], []>} : vector<8x128xf32>, vector<128x128xf32>, vector<8x128xf32> -> vector<8x128xf32>
    %72 = arith.addf %68, %71 : vector<8x128xf32>
    %c2 = arith.constant 2 : index
    %c0_50 = arith.constant 0 : index
    %c0_51 = arith.constant 0 : index
    %73 = vector.load %arg9[%c2, %c0_50, %c0_51] : memref<3x128x128xf32, #tpu.memory_space<vmem>>, vector<1x128x128xf32>
    %74 = vector.shape_cast %73 : vector<1x128x128xf32> to vector<128x128xf32>
    %cst_52 = arith.constant dense<0.000000e+00> : vector<8x128xf32>
    %75 = tpu.matmul %32, %74, %cst_52 {dimension_numbers = #tpu.dot_dimension_numbers<[1], [0], [0], [1], [0, 0, 1, 1], [], []>} : vector<8x128xf32>, vector<128x128xf32>, vector<8x128xf32> -> vector<8x128xf32>
    %76 = arith.addf %72, %75 : vector<8x128xf32>
    %c2_i32_53 = arith.constant 2 : i32
    %77 = vector.broadcast %c2_i32_53 : i32 to vector<8x128xi32>
    %78 = arith.cmpi slt, %34, %77 : vector<8x128xi32>
    %cst_54 = arith.constant -1.000000e+30 : f32
    %79 = vector.broadcast %cst_54 : f32 to vector<8x128xf32>
    %80 = arith.select %78, %76, %79 : vector<8x128xi1>, vector<8x128xf32>
    %cst_55 = arith.constant dense<0xFF800000> : vector<8xf32>
    %81 = vector.multi_reduction <maximumf>, %80, %cst_55 [1] : vector<8x128xf32> to vector<8xf32>
    %82 = vector.shape_cast %81 : vector<8xf32> to vector<8x1xf32>
    %83 = vector.broadcast %82 : vector<8x1xf32> to vector<8x128xf32>
    %84 = arith.subf %80, %83 : vector<8x128xf32>
    %85 = math.exp %84 : vector<8x128xf32>
    %cst_56 = arith.constant dense<0.000000e+00> : vector<8xf32>
    %86 = vector.multi_reduction <add>, %85, %cst_56 [1] : vector<8x128xf32> to vector<8xf32>
    %87 = vector.shape_cast %86 : vector<8xf32> to vector<8x1xf32>
    %88 = math.log %87 : vector<8x1xf32>
    %89 = arith.addf %82, %88 : vector<8x1xf32>
    %c3_i32_57 = arith.constant 3 : i32
    %90 = vector.broadcast %c3_i32_57 : i32 to vector<8x1xi32>
    %91 = arith.cmpi slt, %35, %90 : vector<8x1xi32>
    %92 = vector.extract_strided_slice %76 {offsets = [0, 0], sizes = [8, 1], strides = [1, 1]} : vector<8x128xf32> to vector<8x1xf32>
    %93 = vector.extract_strided_slice %76 {offsets = [0, 1], sizes = [8, 1], strides = [1, 1]} : vector<8x128xf32> to vector<8x1xf32>
    %94 = arith.select %91, %92, %93 : vector<8x1xi1>, vector<8x1xf32>
    %c6_i32 = arith.constant 6 : i32
    %95 = vector.broadcast %c6_i32 : i32 to vector<8x1xi32>
    %96 = arith.cmpi slt, %35, %95 : vector<8x1xi32>
    %97 = arith.extui %96 : vector<8x1xi1> to vector<8x1xi32>
    %98 = arith.sitofp %97 : vector<8x1xi32> to vector<8x1xf32>
    %99 = arith.subf %89, %94 : vector<8x1xf32>
    %100 = arith.mulf %99, %98 : vector<8x1xf32>
    %cst_58 = arith.constant dense<0.000000e+00> : vector<1xf32>
    %101 = vector.multi_reduction <add>, %100, %cst_58 [0] : vector<8x1xf32> to vector<1xf32>
    %102 = vector.shape_cast %101 : vector<1xf32> to vector<1x1xf32>
    %cst_59 = arith.constant 6.000000e+00 : f32
    %103 = vector.broadcast %cst_59 : f32 to vector<1x1xf32>
    %104 = arith.divf %102, %103 : vector<1x1xf32>
    %105 = tpu.iota {dimensions = array<i32: 1>} : vector<1x128xi32>
    %c0_i32 = arith.constant 0 : i32
    %106 = vector.broadcast %c0_i32 : i32 to vector<1x128xi32>
    %107 = arith.cmpi eq, %105, %106 : vector<1x128xi32>
    %c1_i32 = arith.constant 1 : i32
    %108 = vector.broadcast %c1_i32 : i32 to vector<1x128xi32>
    %109 = arith.cmpi eq, %105, %108 : vector<1x128xi32>
    %cst_60 = arith.constant 0.000000e+00 : f32
    %110 = vector.shape_cast %104 : vector<1x1xf32> to vector<1x1xf32>
    %111 = vector.broadcast %110 : vector<1x1xf32> to vector<1x128xf32>
    %112 = vector.broadcast %cst_60 : f32 to vector<1x128xf32>
    %113 = arith.select %109, %111, %112 : vector<1x128xi1>, vector<1x128xf32>
    %114 = vector.shape_cast %62 : vector<1x1xf32> to vector<1x1xf32>
    %115 = vector.broadcast %114 : vector<1x1xf32> to vector<1x128xf32>
    %116 = arith.select %107, %115, %113 : vector<1x128xi1>, vector<1x128xf32>
    %c0_61 = arith.constant 0 : index
    %c0_62 = arith.constant 0 : index
    %117 = vector.load %arg12[%c0_61, %c0_62] : memref<1x128xf32, #tpu.memory_space<vmem>>, vector<1x128xf32>
    tpu.vector_store %arg12[%c0_61, %c0_62], %116 {strides = array<i32>} : memref<1x128xf32, #tpu.memory_space<vmem>>, vector<1x128xf32>,
    return
  }
}

</mosaic_0001>

<llo_original>
// kernel: grade_gc_forward.1
$region0: #{grade_gc_forward.1}
  #allocation0 [shape = 'u32[]', space=smem, size = 0x4, offset = 0x4, fixed_abs, tag = 'smem constant byte address 0x4 - core index']
  #allocation1 [shape = 'u32[144,128]{1,0:T(1,128)}', space=vmem, size = 0x12000, scoped, tag = 'internal scratch']
  %s0 = inlined_call_operand.vmem [shape: f32[24,24], index: 0, kind: input, shape index: {}]
  %s1 = inlined_call_operand.vmem [shape: f32[24,128], index: 1, kind: input, shape index: {}]
  %s2 = inlined_call_operand.vmem [shape: f32[8,24], index: 2, kind: input, shape index: {}]
  %s3 = inlined_call_operand.hbm [shape: f32[2,128,128], index: 3, kind: input, shape index: {}]
  %s4 = inlined_call_operand.vmem [shape: f32[2,1,128], index: 4, kind: input, shape index: {}]
  %s5 = inlined_call_operand.vmem [shape: f32[128,128], index: 5, kind: input, shape index: {}]
  %s6 = inlined_call_operand.vmem [shape: f32[1,128], index: 6, kind: input, shape index: {}]
  %s7 = inlined_call_operand.hbm [shape: f32[128,128], index: 7, kind: input, shape index: {}]
  %s8 = inlined_call_operand.vmem [shape: f32[1,128], index: 8, kind: input, shape index: {}]
  %s9 = inlined_call_operand.hbm [shape: f32[3,128,128], index: 9, kind: input, shape index: {}]
  %s10 = inlined_call_operand.vmem [shape: f32[1,128], index: 10, kind: input, shape index: {}]
  %s11 = inlined_call_operand.vmem [shape: f32[8,128], index: 11, kind: input, shape index: {}]
  %s12 = inlined_call_operand.vmem [shape: f32[1,128], index: 12, kind: output, shape index: {}]
  %s13 = sld [smem:[#allocation0]]
  $region70: #{grade_gc_forward.1} parent=0
    _
  %s15 = ssub.s32 1, %s13
  %s16 = scalar_select 0, %s15, %s13
  $region1: #{grade_gc_forward.1} parent=0
    #allocation2 [shape = 'u8[131072]{0}', space=vmem, size = 0x20000, scoped, tag = 'input window, operand 3, single buffered']
    #allocation3 [shape = 's32[1]{0}', space=sflag, size = 0x4, scoped, tag = 'scoped memory for grade_gc_forward.1']
    #allocation4 [shape = 'u8[65536]{0}', space=vmem, size = 0x10000, scoped, tag = 'input window, operand 7, single buffered']
    #allocation5 [shape = 's32[1]{0}', space=sflag, size = 0x4, scoped, tag = 'scoped memory for grade_gc_forward.1']
    #allocation6 [shape = 'u8[196608]{0}', space=vmem, size = 0x30000, scoped, tag = 'input window, operand 9, single buffered']
    %17 = vsyncpa [#allocation3], 0
    %18 = vsyncpa [#allocation5], 0
    // Predicated region
    $region2: #{grade_gc_forward.1} parent=1 // pred_check
      _
    $region3: #{grade_gc_forward.1} parent=1 // pred_check_branch
      %20 = sbr.rel (0) target = $region5
    $region4: #{grade_gc_forward.1} parent=1 // pred_region
      _
    $region5: #{grade_gc_forward.1} parent=1 // pred_fallthru
      _
    // Predicated region
    $region6: #{grade_gc_forward.1} parent=1 // pred_check
      _
    $region7: #{grade_gc_forward.1} parent=1 // pred_check_branch
      %22 = sbr.rel (0) target = $region9
    $region8: #{grade_gc_forward.1} parent=1 // pred_region
      _
    $region9: #{grade_gc_forward.1} parent=1 // pred_fallthru
      _
    // Predicated region
    $region10: #{grade_gc_forward.1} parent=1 // pred_check
      _
    $region11: #{grade_gc_forward.1} parent=1 // pred_check_branch
      %24 = sbr.rel (0) target = $region13
    $region12: #{grade_gc_forward.1} parent=1 // pred_region
      _
    $region13: #{grade_gc_forward.1} parent=1 // pred_fallthru
      _
    // Predicated region
    $region14: #{grade_gc_forward.1} parent=1 // pred_check
      _
    $region15: #{grade_gc_forward.1} parent=1 // pred_check_branch
      %26 = sbr.rel (0) target = $region17
    $region16: #{grade_gc_forward.1} parent=1 // pred_region
      %s28 = ssub.s32 4096, 4096
      %29 = vsyncadd [#allocation3], %s28
      %s30 = sshll.u32 [#allocation2], 4
      %s31 = int_to_ptr.vmem [resolvable:$true] %s30
      %36 = dma.hbm_to_vmem [thread:$0]  %s3, 4096, %s31, [#allocation3], 128, 128, 8
    $region17: #{grade_gc_forward.1} parent=1 // pred_fallthru
      _
    // Predicated region
    $region18: #{grade_gc_forward.1} parent=1 // pred_check
      _
    $region19: #{grade_gc_forward.1} parent=1 // pred_check_branch
      %38 = sbr.rel (0) target = $region21
    $region20: #{grade_gc_forward.1} parent=1 // pred_region
      _
    $region21: #{grade_gc_forward.1} parent=1 // pred_fallthru
      _
    // Predicated region
    $region22: #{grade_gc_forward.1} parent=1 // pred_check
      _
    $region23: #{grade_gc_forward.1} parent=1 // pred_check_branch
      %40 = sbr.rel (0) target = $region25
    $region24: #{grade_gc_forward.1} parent=1 // pred_region
      _
    $region25: #{grade_gc_forward.1} parent=1 // pred_fallthru
      _
    // Predicated region
    $region26: #{grade_gc_forward.1} parent=1 // pred_check
      _
    $region27: #{grade_gc_forward.1} parent=1 // pred_check_branch
      %42 = sbr.rel (0) target = $region29
    $region28: #{grade_gc_forward.1} parent=1 // pred_region
      _
    $region29: #{grade_gc_forward.1} parent=1 // pred_fallthru
      _
    // Predicated region
    $region30: #{grade_gc_forward.1} parent=1 // pred_check
      _
    $region31: #{grade_gc_forward.1} parent=1 // pred_check_branch
      %44 = sbr.rel (0) target = $region33
    $region32: #{grade_gc_forward.1} parent=1 // pred_region
      %s46 = ssub.s32 2048, 2048
      %47 = vsyncadd [#allocation5], %s46
      %s48 = sshll.u32 [#allocation4], 4
      %s49 = int_to_ptr.vmem [resolvable:$true] %s48
      %54 = dma.hbm_to_vmem [thread:$0]  %s7, 2048, %s49, [#allocation5], 128, 128, 8
    $region33: #{grade_gc_forward.1} parent=1 // pred_fallthru
      _
    // Predicated region
    $region34: #{grade_gc_forward.1} parent=1 // pred_check
      _
    $region35: #{grade_gc_forward.1} parent=1 // pred_check_branch
      %56 = sbr.rel (0) target = $region37
    $region36: #{grade_gc_forward.1} parent=1 // pred_region
      _
    $region37: #{grade_gc_forward.1} parent=1 // pred_fallthru
      _
    // Predicated region
    $region38: #{grade_gc_forward.1} parent=1 // pred_check
      _
    $region39: #{grade_gc_forward.1} parent=1 // pred_check_branch
      %58 = sbr.rel (0) target = $region41
    $region40: #{grade_gc_forward.1} parent=1 // pred_region
      %s60 = ssub.s32 6144, 6144
      %61 = vsyncadd [#allocation5], %s60
      %s62 = sshll.u32 [#allocation6], 4
      %s63 = int_to_ptr.vmem [resolvable:$true] %s62
      %68 = dma.hbm_to_vmem [thread:$0]  %s9, 6144, %s63, [#allocation5], 128, 128, 8
    $region41: #{grade_gc_forward.1} parent=1 // pred_fallthru
      _
    // Predicated region
    $region42: #{grade_gc_forward.1} parent=1 // pred_check
      _
    $region43: #{grade_gc_forward.1} parent=1 // pred_check_branch
      %70 = sbr.rel (0) target = $region45
    $region44: #{grade_gc_forward.1} parent=1 // pred_region
      _
    $region45: #{grade_gc_forward.1} parent=1 // pred_fallthru
      _
    // Predicated region
    $region46: #{grade_gc_forward.1} parent=1 // pred_check
      _
    $region47: #{grade_gc_forward.1} parent=1 // pred_check_branch
      %72 = sbr.rel (0) target = $region49
    $region48: #{grade_gc_forward.1} parent=1 // pred_region
      _
    $region49: #{grade_gc_forward.1} parent=1 // pred_fallthru
      _
    // Predicated region
    $region50: #{grade_gc_forward.1} parent=1 // pred_check
      _
    $region51: #{grade_gc_forward.1} parent=1 // pred_check_branch
      %74 = sbr.rel (0) target = $region53
    $region52: #{grade_gc_forward.1} parent=1 // pred_region
      %75 = dma.done [#allocation3], 4096
    $region53: #{grade_gc_forward.1} parent=1 // pred_fallthru
      _
    // Predicated region
    $region54: #{grade_gc_forward.1} parent=1 // pred_check
      _
    $region55: #{grade_gc_forward.1} parent=1 // pred_check_branch
      %77 = sbr.rel (0) target = $region57
    $region56: #{grade_gc_forward.1} parent=1 // pred_region
      %78 = dma.done [#allocation5], 2048
    $region57: #{grade_gc_forward.1} parent=1 // pred_fallthru
      _
    // Predicated region
    $region58: #{grade_gc_forward.1} parent=1 // pred_check
      _
    $region59: #{grade_gc_forward.1} parent=1 // pred_check_branch
      %80 = sbr.rel (0) target = $region61
    $region60: #{grade_gc_forward.1} parent=1 // pred_region
      %81 = dma.done [#allocation5], 6144
    $region61: #{grade_gc_forward.1} parent=1 // pred_fallthru
      _
    %v82 = vld [vmem:[%s0] sm:$0xff]
    %v83 = vld [vmem:[%s0 + $0x8] sm:$0xff]
    %v84 = vld [vmem:[%s0 + $0x10] sm:$0xff]
    %v85 = vld [vmem:[%s1] sm:$0xff]
    %v86 = vld [vmem:[%s1 + $0x8] sm:$0xff]
    %v87 = vld [vmem:[%s1 + $0x10] sm:$0xff]
    %v88 = vld [vmem:[%s2] sm:$0xff]
    %v89 = vld [vmem:[#allocation2] sm:$0xff]
    %v90 = vld [vmem:[#allocation2 + $0x8] sm:$0xff]
    %v91 = vld [vmem:[#allocation2 + $0x10] sm:$0xff]
    %v92 = vld [vmem:[#allocation2 + $0x18] sm:$0xff]
    %v93 = vld [vmem:[#allocation2 + $0x20] sm:$0xff]
    %v94 = vld [vmem:[#allocation2 + $0x28] sm:$0xff]
    %v95 = vld [vmem:[#allocation2 + $0x30] sm:$0xff]
    %v96 = vld [vmem:[#allocation2 + $0x38] sm:$0xff]
    %v97 = vld [vmem:[#allocation2 + $0x40] sm:$0xff]
    %v98 = vld [vmem:[#allocation2 + $0x48] sm:$0xff]
    %v99 = vld [vmem:[#allocation2 + $0x50] sm:$0xff]
    %v100 = vld [vmem:[#allocation2 + $0x58] sm:$0xff]
    %v101 = vld [vmem:[#allocation2 + $0x60] sm:$0xff]
    %v102 = vld [vmem:[#allocation2 + $0x68] sm:$0xff]
    %v103 = vld [vmem:[#allocation2 + $0x70] sm:$0xff]
    %v104 = vld [vmem:[#allocation2 + $0x78] sm:$0xff]
    %105 = vmatprep.subr.mxu0 0.0
    %106 = vmatpush1.msra.mxu0 %v89
    %107 = vmatprep.subr.mxu0 0.0
    %108 = vmatpush1.msra.mxu0 %v90
    %109 = vmatprep.subr.mxu0 0.0
    %110 = vmatpush1.msra.mxu0 %v91
    %111 = vmatprep.subr.mxu0 0.0
    %112 = vmatpush1.msra.mxu0 %v92
    %113 = vmatprep.subr.mxu0 0.0
    %114 = vmatpush1.msra.mxu0 %v93
    %115 = vmatprep.subr.mxu0 0.0
    %116 = vmatpush1.msra.mxu0 %v94
    %117 = vmatprep.subr.mxu0 0.0
    %118 = vmatpush1.msra.mxu0 %v95
    %119 = vmatprep.subr.mxu0 0.0
    %120 = vmatpush1.msra.mxu0 %v96
    %121 = vmatprep.subr.mxu0 0.0
    %122 = vmatpush1.msra.mxu0 %v97
    %123 = vmatprep.subr.mxu0 0.0
    %124 = vmatpush1.msra.mxu0 %v98
    %125 = vmatprep.subr.mxu0 0.0
    %126 = vmatpush1.msra.mxu0 %v99
    %127 = vmatprep.subr.mxu0 0.0
    %128 = vmatpush1.msra.mxu0 %v100
    %129 = vmatprep.subr.mxu0 0.0
    %130 = vmatpush1.msra.mxu0 %v101
    %131 = vmatprep.subr.mxu0 0.0
    %132 = vmatpush1.msra.mxu0 %v102
    %133 = vmatprep.subr.mxu0 0.0
    %134 = vmatpush1.msra.mxu0 %v103
    %135 = vmatprep.subr.mxu0 0.0
    %136 = vmatpush1.msra.mxu0 %v104
    %137 = vmatprep.subr.mxu0 0.0
    %138 = vmatpush1.msra.mxu0 0.0
    %139 = vmatprep.subr.mxu0 0.0
    %140 = vmatpush1.msra.mxu0 0.0
    %141 = vmatprep.subr.mxu0 0.0
    %142 = vmatpush1.msra.mxu0 0.0
    %143 = vmatprep.subr.mxu0 0.0
    %144 = vmatpush1.msra.mxu0 0.0
    %145 = vmatprep.subr.mxu0 0.0
    %146 = vmatpush1.msra.mxu0 0.0
    %147 = vmatprep.subr.mxu0 0.0
    %148 = vmatpush1.msra.mxu0 0.0
    %149 = vmatprep.subr.mxu0 0.0
    %150 = vmatpush1.msra.mxu0 0.0
    %151 = vmatprep.subr.mxu0 0.0
    %152 = vmatpush1.msra.mxu0 0.0
    %153 = vmatprep.subr.mxu0 0.0
    %154 = vmatpush1.msra.mxu0 0.0
    %155 = vmatprep.subr.mxu0 0.0
    %156 = vmatpush1.msra.mxu0 0.0
    %157 = vmatprep.subr.mxu0 0.0
    %158 = vmatpush1.msra.mxu0 0.0
    %159 = vmatprep.subr.mxu0 0.0
    %160 = vmatpush1.msra.mxu0 0.0
    %161 = vmatprep.subr.mxu0 0.0
    %162 = vmatpush1.msra.mxu0 0.0
    %163 = vmatprep.subr.mxu0 0.0
    %164 = vmatpush1.msra.mxu0 0.0
    %165 = vmatprep.subr.mxu0 0.0
    %166 = vmatpush1.msra.mxu0 0.0
    %167 = vmatprep.subr.mxu0 0.0
    %168 = vmatpush1.msra.mxu0 0.0
    %169 = vmatprep.mubr.f32.mxu0 0.0
    %170 = vmatmul.mubr.f32.gmra.mrb[0].mxu0 %v85
    %v171 = vpop.f32.mrb[0].mxu0
    %v172 = vadd.f32 0.0, %v171
    %v173 = vpop.f32.mrb[0].mxu0
    %174 = vmatprep.mubr.f32.mxu0 0.0
    %175 = vmatmul.mubr.f32.gmra.mrb[0].mxu0 %v86
    %v176 = vpop.f32.mrb[0].mxu0
    %v177 = vadd.f32 0.0, %v176
    %v178 = vpop.f32.mrb[0].mxu0
    %179 = vmatprep.mubr.f32.mxu0 0.0
    %180 = vmatmul.mubr.f32.gmra.mrb[0].mxu0 %v87
    %v181 = vpop.f32.mrb[0].mxu0
    %v182 = vadd.f32 0.0, %v181
    %v183 = vpop.f32.mrb[0].mxu0
    %184 = vdwg.mxu0
    %v185 = vld [vmem:[%s4] sm:$0x1]
    %v187 = vlaneseq
    %v188 = vshrl.u32 %v187, 7
    %v189 = vsub.s32 0, %v188
    %v190 = vrot.slane %v185, %v189
    %vm192 = vcmask 195584
    %v194 = vsel %vm192, %v82, 0
    %v197 = vsel %vm192, %v83, 0
    %v200 = vsel %vm192, %v84, 0
    %202 = vmatprep.subr.mxu0 0.0
    %203 = vmatpush1.msra.mxu0 %v172
    %204 = vmatprep.subr.mxu0 0.0
    %205 = vmatpush1.msra.mxu0 %v177
    %206 = vmatprep.subr.mxu0 0.0
    %207 = vmatpush1.msra.mxu0 %v182
    %208 = vmatprep.subr.mxu0 0.0
    %209 = vmatpush1.msra.mxu0 0.0
    %210 = vmatprep.subr.mxu0 0.0
    %211 = vmatpush1.msra.mxu0 0.0
    %212 = vmatprep.subr.mxu0 0.0
    %213 = vmatpush1.msra.mxu0 0.0
    %214 = vmatprep.subr.mxu0 0.0
    %215 = vmatpush1.msra.mxu0 0.0
    %216 = vmatprep.subr.mxu0 0.0
    %217 = vmatpush1.msra.mxu0 0.0
    %218 = vmatprep.subr.mxu0 0.0
    %219 = vmatpush1.msra.mxu0 0.0
    %220 = vmatprep.subr.mxu0 0.0
    %221 = vmatpush1.msra.mxu0 0.0
    %222 = vmatprep.subr.mxu0 0.0
    %223 = vmatpush1.msra.mxu0 0.0
    %224 = vmatprep.subr.mxu0 0.0
    %225 = vmatpush1.msra.mxu0 0.0
    %226 = vmatprep.subr.mxu0 0.0
    %227 = vmatpush1.msra.mxu0 0.0
    %228 = vmatprep.subr.mxu0 0.0
    %229 = vmatpush1.msra.mxu0 0.0
    %230 = vmatprep.subr.mxu0 0.0
    %231 = vmatpush1.msra.mxu0 0.0
    %232 = vmatprep.subr.mxu0 0.0
    %233 = vmatpush1.msra.mxu0 0.0
    %234 = vmatprep.subr.mxu0 0.0
    %235 = vmatpush1.msra.mxu0 0.0
    %236 = vmatprep.subr.mxu0 0.0
    %237 = vmatpush1.msra.mxu0 0.0
    %238 = vmatprep.subr.mxu0 0.0
    %239 = vmatpush1.msra.mxu0 0.0
    %240 = vmatprep.subr.mxu0 0.0
    %241 = vmatpush1.msra.mxu0 0.0
    %242 = vmatprep.subr.mxu0 0.0
    %243 = vmatpush1.msra.mxu0 0.0
    %244 = vmatprep.subr.mxu0 0.0
    %245 = vmatpush1.msra.mxu0 0.0
    %246 = vmatprep.subr.mxu0 0.0
    %247 = vmatpush1.msra.mxu0 0.0
    %248 = vmatprep.subr.mxu0 0.0
    %249 = vmatpush1.msra.mxu0 0.0
    %250 = vmatprep.subr.mxu0 0.0
    %251 = vmatpush1.msra.mxu0 0.0
    %252 = vmatprep.subr.mxu0 0.0
    %253 = vmatpush1.msra.mxu0 0.0
    %254 = vmatprep.subr.mxu0 0.0
    %255 = vmatpush1.msra.mxu0 0.0
    %256 = vmatprep.subr.mxu0 0.0
    %257 = vmatpush1.msra.mxu0 0.0
    %258 = vmatprep.subr.mxu0 0.0
    %259 = vmatpush1.msra.mxu0 0.0
    %260 = vmatprep.subr.mxu0 0.0
    %261 = vmatpush1.msra.mxu0 0.0
    %262 = vmatprep.subr.mxu0 0.0
    %263 = vmatpush1.msra.mxu0 0.0
    %264 = vmatprep.subr.mxu0 0.0
    %265 = vmatpush1.msra.mxu0 0.0
    %266 = vmatprep.mubr.f32.mxu0 0.0
    %267 = vmatmul.mubr.f32.gmra.mrb[0].mxu0 %v194
    %v268 = vpop.f32.mrb[0].mxu0
    %v269 = vadd.f32 %v190, %v268
    %v270 = vpop.f32.mrb[0].mxu0
    %271 = vmatprep.mubr.f32.mxu0 0.0
    %272 = vmatmul.mubr.f32.gmra.mrb[0].mxu0 %v197
    %v273 = vpop.f32.mrb[0].mxu0
    %v274 = vadd.f32 %v190, %v273
    %v275 = vpop.f32.mrb[0].mxu0
    %276 = vmatprep.mubr.f32.mxu0 0.0
    %277 = vmatmul.mubr.f32.gmra.mrb[0].mxu0 %v200
    %v278 = vpop.f32.mrb[0].mxu0
    %v279 = vadd.f32 %v190, %v278
    %v280 = vpop.f32.mrb[0].mxu0
    %281 = vdwg.mxu0
    %v283 = vsel %vm192, %v88, 0
    %285 = vmatprep.subr.mxu0 0.0
    %286 = vmatpush1.msra.mxu0 %v269
    %287 = vmatprep.subr.mxu0 0.0
    %288 = vmatpush1.msra.mxu0 %v274
    %289 = vmatprep.subr.mxu0 0.0
    %290 = vmatpush1.msra.mxu0 %v279
    %291 = vmatprep.subr.mxu0 0.0
    %292 = vmatpush1.msra.mxu0 0.0
    %293 = vmatprep.subr.mxu0 0.0
    %294 = vmatpush1.msra.mxu0 0.0
    %295 = vmatprep.subr.mxu0 0.0
    %296 = vmatpush1.msra.mxu0 0.0
    %297 = vmatprep.subr.mxu0 0.0
    %298 = vmatpush1.msra.mxu0 0.0
    %299 = vmatprep.subr.mxu0 0.0
    %300 = vmatpush1.msra.mxu0 0.0
    %301 = vmatprep.subr.mxu0 0.0
    %302 = vmatpush1.msra.mxu0 0.0
    %303 = vmatprep.subr.mxu0 0.0
    %304 = vmatpush1.msra.mxu0 0.0
    %305 = vmatprep.subr.mxu0 0.0
    %306 = vmatpush1.msra.mxu0 0.0
    %307 = vmatprep.subr.mxu0 0.0
    %308 = vmatpush1.msra.mxu0 0.0
    %309 = vmatprep.subr.mxu0 0.0
    %310 = vmatpush1.msra.mxu0 0.0
    %311 = vmatprep.subr.mxu0 0.0
    %312 = vmatpush1.msra.mxu0 0.0
    %313 = vmatprep.subr.mxu0 0.0
    %314 = vmatpush1.msra.mxu0 0.0
    %315 = vmatprep.subr.mxu0 0.0
    %316 = vmatpush1.msra.mxu0 0.0
    %317 = vmatprep.subr.mxu0 0.0
    %318 = vmatpush1.msra.mxu0 0.0
    %319 = vmatprep.subr.mxu0 0.0
    %320 = vmatpush1.msra.mxu0 0.0
    %321 = vmatprep.subr.mxu0 0.0
    %322 = vmatpush1.msra.mxu0 0.0
    %323 = vmatprep.subr.mxu0 0.0
    %324 = vmatpush1.msra.mxu0 0.0
    %325 = vmatprep.subr.mxu0 0.0
    %326 = vmatpush1.msra.mxu0 0.0
    %327 = vmatprep.subr.mxu0 0.0
    %328 = vmatpush1.msra.mxu0 0.0
    %329 = vmatprep.subr.mxu0 0.0
    %330 = vmatpush1.msra.mxu0 0.0
    %331 = vmatprep.subr.mxu0 0.0
    %332 = vmatpush1.msra.mxu0 0.0
    %333 = vmatprep.subr.mxu0 0.0
    %334 = vmatpush1.msra.mxu0 0.0
    %335 = vmatprep.subr.mxu0 0.0
    %336 = vmatpush1.msra.mxu0 0.0
    %337 = vmatprep.subr.mxu0 0.0
    %338 = vmatpush1.msra.mxu0 0.0
    %339 = vmatprep.subr.mxu0 0.0
    %340 = vmatpush1.msra.mxu0 0.0
    %341 = vmatprep.subr.mxu0 0.0
    %342 = vmatpush1.msra.mxu0 0.0
    %343 = vmatprep.subr.mxu0 0.0
    %344 = vmatpush1.msra.mxu0 0.0
    %345 = vmatprep.subr.mxu0 0.0
    %346 = vmatpush1.msra.mxu0 0.0
    %347 = vmatprep.subr.mxu0 0.0
    %348 = vmatpush1.msra.mxu0 0.0
    %349 = vmatprep.mubr.f32.mxu0 0.0
    %350 = vmatmul.mubr.f32.gmra.mrb[0].mxu0 %v283
    %v351 = vpop.f32.mrb[0].mxu0
    %v352 = vadd.f32 0.0, %v351
    %v353 = vpop.f32.mrb[0].mxu0
    %354 = vdwg.mxu0
    %s355 = scalar_lea.vmem [#allocation2], 128
    %v356 = vld [vmem:[%s355] sm:$0xff]
    %v357 = vld [vmem:[%s355 + $0x8] sm:$0xff]
    %v358 = vld [vmem:[%s355 + $0x10] sm:$0xff]
    %v359 = vld [vmem:[%s355 + $0x18] sm:$0xff]
    %v360 = vld [vmem:[%s355 + $0x20] sm:$0xff]
    %v361 = vld [vmem:[%s355 + $0x28] sm:$0xff]
    %v362 = vld [vmem:[%s355 + $0x30] sm:$0xff]
    %v363 = vld [vmem:[%s355 + $0x38] sm:$0xff]
    %v364 = vld [vmem:[%s355 + $0x40] sm:$0xff]
    %v365 = vld [vmem:[%s355 + $0x48] sm:$0xff]
    %v366 = vld [vmem:[%s355 + $0x50] sm:$0xff]
    %v367 = vld [vmem:[%s355 + $0x58] sm:$0xff]
    %v368 = vld [vmem:[%s355 + $0x60] sm:$0xff]
    %v369 = vld [vmem:[%s355 + $0x68] sm:$0xff]
    %v370 = vld [vmem:[%s355 + $0x70] sm:$0xff]
    %v371 = vld [vmem:[%s355 + $0x78] sm:$0xff]
    %372 = vmatprep.subr.mxu0 0.0
    %373 = vmatpush1.msra.mxu0 %v356
    %374 = vmatprep.subr.mxu0 0.0
    %375 = vmatpush1.msra.mxu0 %v357
    %376 = vmatprep.subr.mxu0 0.0
    %377 = vmatpush1.msra.mxu0 %v358
    %378 = vmatprep.subr.mxu0 0.0
    %379 = vmatpush1.msra.mxu0 %v359
    %380 = vmatprep.subr.mxu0 0.0
    %381 = vmatpush1.msra.mxu0 %v360
    %382 = vmatprep.subr.mxu0 0.0
    %383 = vmatpush1.msra.mxu0 %v361
    %384 = vmatprep.subr.mxu0 0.0
    %385 = vmatpush1.msra.mxu0 %v362
    %386 = vmatprep.subr.mxu0 0.0
    %387 = vmatpush1.msra.mxu0 %v363
    %388 = vmatprep.subr.mxu0 0.0
    %389 = vmatpush1.msra.mxu0 %v364
    %390 = vmatprep.subr.mxu0 0.0
    %391 = vmatpush1.msra.mxu0 %v365
    %392 = vmatprep.subr.mxu0 0.0
    %393 = vmatpush1.msra.mxu0 %v366
    %394 = vmatprep.subr.mxu0 0.0
    %395 = vmatpush1.msra.mxu0 %v367
    %396 = vmatprep.subr.mxu0 0.0
    %397 = vmatpush1.msra.mxu0 %v368
    %398 = vmatprep.subr.mxu0 0.0
    %399 = vmatpush1.msra.mxu0 %v369
    %400 = vmatprep.subr.mxu0 0.0
    %401 = vmatpush1.msra.mxu0 %v370
    %402 = vmatprep.subr.mxu0 0.0
    %403 = vmatpush1.msra.mxu0 %v371
    %404 = vmatprep.subr.mxu0 0.0
    %405 = vmatpush1.msra.mxu0 0.0
    %406 = vmatprep.subr.mxu0 0.0
    %407 = vmatpush1.msra.mxu0 0.0
    %408 = vmatprep.subr.mxu0 0.0
    %409 = vmatpush1.msra.mxu0 0.0
    %410 = vmatprep.subr.mxu0 0.0
    %411 = vmatpush1.msra.mxu0 0.0
    %412 = vmatprep.subr.mxu0 0.0
    %413 = vmatpush1.msra.mxu0 0.0
    %414 = vmatprep.subr.mxu0 0.0
    %415 = vmatpush1.msra.mxu0 0.0
    %416 = vmatprep.subr.mxu0 0.0
    %417 = vmatpush1.msra.mxu0 0.0
    %418 = vmatprep.subr.mxu0 0.0
    %419 = vmatpush1.msra.mxu0 0.0
    %420 = vmatprep.subr.mxu0 0.0
    %421 = vmatpush1.msra.mxu0 0.0
    %422 = vmatprep.subr.mxu0 0.0
    %423 = vmatpush1.msra.mxu0 0.0
    %424 = vmatprep.subr.mxu0 0.0
    %425 = vmatpush1.msra.mxu0 0.0
    %426 = vmatprep.subr.mxu0 0.0
    %427 = vmatpush1.msra.mxu0 0.0
    %428 = vmatprep.subr.mxu0 0.0
    %429 = vmatpush1.msra.mxu0 0.0
    %430 = vmatprep.subr.mxu0 0.0
    %431 = vmatpush1.msra.mxu0 0.0
    %432 = vmatprep.subr.mxu0 0.0
    %433 = vmatpush1.msra.mxu0 0.0
    %434 = vmatprep.subr.mxu0 0.0
    %435 = vmatpush1.msra.mxu0 0.0
    %436 = vmatprep.mubr.f32.mxu0 0.0
    %437 = vmatmul.mubr.f32.gmra.mrb[0].mxu0 %v269
    %v438 = vpop.f32.mrb[0].mxu0
    %v439 = vadd.f32 0.0, %v438
    %v440 = vpop.f32.mrb[0].mxu0
    %441 = vmatprep.mubr.f32.mxu0 0.0
    %442 = vmatmul.mubr.f32.gmra.mrb[0].mxu0 %v274
    %v443 = vpop.f32.mrb[0].mxu0
    %v444 = vadd.f32 0.0, %v443
    %v445 = vpop.f32.mrb[0].mxu0
    %446 = vmatprep.mubr.f32.mxu0 0.0
    %447 = vmatmul.mubr.f32.gmra.mrb[0].mxu0 %v279
    %v448 = vpop.f32.mrb[0].mxu0
    %v449 = vadd.f32 0.0, %v448
    %v450 = vpop.f32.mrb[0].mxu0
    %451 = vdwg.mxu0
    %s452 = scalar_lea.vmem %s4, 1
    %v453 = vld [vmem:[%s452] sm:$0x1]
    %v455 = vlaneseq
    %v456 = vshrl.u32 %v455, 7
    %v457 = vsub.s32 0, %v456
    %v458 = vrot.slane %v453, %v457
    %460 = vmatprep.subr.mxu0 0.0
    %461 = vmatpush1.msra.mxu0 %v439
    %462 = vmatprep.subr.mxu0 0.0
    %463 = vmatpush1.msra.mxu0 %v444
    %464 = vmatprep.subr.mxu0 0.0
    %465 = vmatpush1.msra.mxu0 %v449
    %466 = vmatprep.subr.mxu0 0.0
    %467 = vmatpush1.msra.mxu0 0.0
    %468 = vmatprep.subr.mxu0 0.0
    %469 = vmatpush1.msra.mxu0 0.0
    %470 = vmatprep.subr.mxu0 0.0
    %471 = vmatpush1.msra.mxu0 0.0
    %472 = vmatprep.subr.mxu0 0.0
    %473 = vmatpush1.msra.mxu0 0.0
    %474 = vmatprep.subr.mxu0 0.0
    %475 = vmatpush1.msra.mxu0 0.0
    %476 = vmatprep.subr.mxu0 0.0
    %477 = vmatpush1.msra.mxu0 0.0
    %478 = vmatprep.subr.mxu0 0.0
    %479 = vmatpush1.msra.mxu0 0.0
    %480 = vmatprep.subr.mxu0 0.0
    %481 = vmatpush1.msra.mxu0 0.0
    %482 = vmatprep.subr.mxu0 0.0
    %483 = vmatpush1.msra.mxu0 0.0
    %484 = vmatprep.subr.mxu0 0.0
    %485 = vmatpush1.msra.mxu0 0.0
    %486 = vmatprep.subr.mxu0 0.0
    %487 = vmatpush1.msra.mxu0 0.0
    %488 = vmatprep.subr.mxu0 0.0
    %489 = vmatpush1.msra.mxu0 0.0
    %490 = vmatprep.subr.mxu0 0.0
    %491 = vmatpush1.msra.mxu0 0.0
    %492 = vmatprep.subr.mxu0 0.0
    %493 = vmatpush1.msra.mxu0 0.0
    %494 = vmatprep.subr.mxu0 0.0
    %495 = vmatpush1.msra.mxu0 0.0
    %496 = vmatprep.subr.mxu0 0.0
    %497 = vmatpush1.msra.mxu0 0.0
    %498 = vmatprep.subr.mxu0 0.0
    %499 = vmatpush1.msra.mxu0 0.0
    %500 = vmatprep.subr.mxu0 0.0
    %501 = vmatpush1.msra.mxu0 0.0
    %502 = vmatprep.subr.mxu0 0.0
    %503 = vmatpush1.msra.mxu0 0.0
    %504 = vmatprep.subr.mxu0 0.0
    %505 = vmatpush1.msra.mxu0 0.0
    %506 = vmatprep.subr.mxu0 0.0
    %507 = vmatpush1.msra.mxu0 0.0
    %508 = vmatprep.subr.mxu0 0.0
    %509 = vmatpush1.msra.mxu0 0.0
    %510 = vmatprep.subr.mxu0 0.0
    %511 = vmatpush1.msra.mxu0 0.0
    %512 = vmatprep.subr.mxu0 0.0
    %513 = vmatpush1.msra.mxu0 0.0
    %514 = vmatprep.subr.mxu0 0.0
    %515 = vmatpush1.msra.mxu0 0.0
    %516 = vmatprep.subr.mxu0 0.0
    %517 = vmatpush1.msra.mxu0 0.0
    %518 = vmatprep.subr.mxu0 0.0
    %519 = vmatpush1.msra.mxu0 0.0
    %520 = vmatprep.subr.mxu0 0.0
    %521 = vmatpush1.msra.mxu0 0.0
    %522 = vmatprep.subr.mxu0 0.0
    %523 = vmatpush1.msra.mxu0 0.0
    %524 = vmatprep.mubr.f32.mxu0 0.0
    %525 = vmatmul.mubr.f32.gmra.mrb[0].mxu0 %v194
    %v526 = vpop.f32.mrb[0].mxu0
    %v527 = vadd.f32 %v458, %v526
    %v528 = vpop.f32.mrb[0].mxu0
    %529 = vmatprep.mubr.f32.mxu0 0.0
    %530 = vmatmul.mubr.f32.gmra.mrb[0].mxu0 %v197
    %v531 = vpop.f32.mrb[0].mxu0
    %v532 = vadd.f32 %v458, %v531
    %v533 = vpop.f32.mrb[0].mxu0
    %534 = vmatprep.mubr.f32.mxu0 0.0
    %535 = vmatmul.mubr.f32.gmra.mrb[0].mxu0 %v200
    %v536 = vpop.f32.mrb[0].mxu0
    %v537 = vadd.f32 %v458, %v536
    %v538 = vpop.f32.mrb[0].mxu0
    %539 = vdwg.mxu0
    %540 = vmatprep.subr.mxu0 0.0
    %541 = vmatpush1.msra.mxu0 %v527
    %542 = vmatprep.subr.mxu0 0.0
    %543 = vmatpush1.msra.mxu0 %v532
    %544 = vmatprep.subr.mxu0 0.0
    %545 = vmatpush1.msra.mxu0 %v537
    %546 = vmatprep.subr.mxu0 0.0
    %547 = vmatpush1.msra.mxu0 0.0
    %548 = vmatprep.subr.mxu0 0.0
    %549 = vmatpush1.msra.mxu0 0.0
    %550 = vmatprep.subr.mxu0 0.0
    %551 = vmatpush1.msra.mxu0 0.0
    %552 = vmatprep.subr.mxu0 0.0
    %553 = vmatpush1.msra.mxu0 0.0
    %554 = vmatprep.subr.mxu0 0.0
    %555 = vmatpush1.msra.mxu0 0.0
    %556 = vmatprep.subr.mxu0 0.0
    %557 = vmatpush1.msra.mxu0 0.0
    %558 = vmatprep.subr.mxu0 0.0
    %559 = vmatpush1.msra.mxu0 0.0
    %560 = vmatprep.subr.mxu0 0.0
    %561 = vmatpush1.msra.mxu0 0.0
    %562 = vmatprep.subr.mxu0 0.0
    %563 = vmatpush1.msra.mxu0 0.0
    %564 = vmatprep.subr.mxu0 0.0
    %565 = vmatpush1.msra.mxu0 0.0
    %566 = vmatprep.subr.mxu0 0.0
    %567 = vmatpush1.msra.mxu0 0.0
    %568 = vmatprep.subr.mxu0 0.0
    %569 = vmatpush1.msra.mxu0 0.0
    %570 = vmatprep.subr.mxu0 0.0
    %571 = vmatpush1.msra.mxu0 0.0
    %572 = vmatprep.subr.mxu0 0.0
    %573 = vmatpush1.msra.mxu0 0.0
    %574 = vmatprep.subr.mxu0 0.0
    %575 = vmatpush1.msra.mxu0 0.0
    %576 = vmatprep.subr.mxu0 0.0
    %577 = vmatpush1.msra.mxu0 0.0
    %578 = vmatprep.subr.mxu0 0.0
    %579 = vmatpush1.msra.mxu0 0.0
    %580 = vmatprep.subr.mxu0 0.0
    %581 = vmatpush1.msra.mxu0 0.0
    %582 = vmatprep.subr.mxu0 0.0
    %583 = vmatpush1.msra.mxu0 0.0
    %584 = vmatprep.subr.mxu0 0.0
    %585 = vmatpush1.msra.mxu0 0.0
    %586 = vmatprep.subr.mxu0 0.0
    %587 = vmatpush1.msra.mxu0 0.0
    %588 = vmatprep.subr.mxu0 0.0
    %589 = vmatpush1.msra.mxu0 0.0
    %590 = vmatprep.subr.mxu0 0.0
    %591 = vmatpush1.msra.mxu0 0.0
    %592 = vmatprep.subr.mxu0 0.0
    %593 = vmatpush1.msra.mxu0 0.0
    %594 = vmatprep.subr.mxu0 0.0
    %595 = vmatpush1.msra.mxu0 0.0
    %596 = vmatprep.subr.mxu0 0.0
    %597 = vmatpush1.msra.mxu0 0.0
    %598 = vmatprep.subr.mxu0 0.0
    %599 = vmatpush1.msra.mxu0 0.0
    %600 = vmatprep.subr.mxu0 0.0
    %601 = vmatpush1.msra.mxu0 0.0
    %602 = vmatprep.subr.mxu0 0.0
    %603 = vmatpush1.msra.mxu0 0.0
    %604 = vmatprep.mubr.f32.mxu0 0.0
    %605 = vmatmul.mubr.f32.gmra.mrb[0].mxu0 %v283
    %v606 = vpop.f32.mrb[0].mxu0
    %v607 = vadd.f32 0.0, %v606
    %v608 = vpop.f32.mrb[0].mxu0
    %609 = vdwg.mxu0
    %v610 = vld [vmem:[%s5] sm:$0xff]
    %v611 = vld [vmem:[%s5 + $0x8] sm:$0xff]
    %v612 = vld [vmem:[%s5 + $0x10] sm:$0xff]
    %v613 = vld [vmem:[%s5 + $0x18] sm:$0xff]
    %v614 = vld [vmem:[%s5 + $0x20] sm:$0xff]
    %v615 = vld [vmem:[%s5 + $0x28] sm:$0xff]
    %v616 = vld [vmem:[%s5 + $0x30] sm:$0xff]
    %v617 = vld [vmem:[%s5 + $0x38] sm:$0xff]
    %v618 = vld [vmem:[%s5 + $0x40] sm:$0xff]
    %v619 = vld [vmem:[%s5 + $0x48] sm:$0xff]
    %v620 = vld [vmem:[%s5 + $0x50] sm:$0xff]
    %v621 = vld [vmem:[%s5 + $0x58] sm:$0xff]
    %v622 = vld [vmem:[%s5 + $0x60] sm:$0xff]
    %v623 = vld [vmem:[%s5 + $0x68] sm:$0xff]
    %v624 = vld [vmem:[%s5 + $0x70] sm:$0xff]
    %v625 = vld [vmem:[%s5 + $0x78] sm:$0xff]
    %v626 = vld [vmem:[%s6] sm:$0x1]
    %v628 = vlaneseq
    %v629 = vshrl.u32 %v628, 7
    %v630 = vsub.s32 0, %v629
    %v631 = vrot.slane %v626, %v630
    %633 = vmatprep.subr.mxu0 0.0
    %634 = vmatpush1.msra.mxu0 %v610
    %635 = vmatprep.subr.mxu0 0.0
    %636 = vmatpush1.msra.mxu0 %v611
    %637 = vmatprep.subr.mxu0 0.0
    %638 = vmatpush1.msra.mxu0 %v612
    %639 = vmatprep.subr.mxu0 0.0
    %640 = vmatpush1.msra.mxu0 %v613
    %641 = vmatprep.subr.mxu0 0.0
    %642 = vmatpush1.msra.mxu0 %v614
    %643 = vmatprep.subr.mxu0 0.0
    %644 = vmatpush1.msra.mxu0 %v615
    %645 = vmatprep.subr.mxu0 0.0
    %646 = vmatpush1.msra.mxu0 %v616
    %647 = vmatprep.subr.mxu0 0.0
    %648 = vmatpush1.msra.mxu0 %v617
    %649 = vmatprep.subr.mxu0 0.0
    %650 = vmatpush1.msra.mxu0 %v618
    %651 = vmatprep.subr.mxu0 0.0
    %652 = vmatpush1.msra.mxu0 %v619
    %653 = vmatprep.subr.mxu0 0.0
    %654 = vmatpush1.msra.mxu0 %v620
    %655 = vmatprep.subr.mxu0 0.0
    %656 = vmatpush1.msra.mxu0 %v621
    %657 = vmatprep.subr.mxu0 0.0
    %658 = vmatpush1.msra.mxu0 %v622
    %659 = vmatprep.subr.mxu0 0.0
    %660 = vmatpush1.msra.mxu0 %v623
    %661 = vmatprep.subr.mxu0 0.0
    %662 = vmatpush1.msra.mxu0 %v624
    %663 = vmatprep.subr.mxu0 0.0
    %664 = vmatpush1.msra.mxu0 %v625
    %665 = vmatprep.subr.mxu0 0.0
    %666 = vmatpush1.msra.mxu0 0.0
    %667 = vmatprep.subr.mxu0 0.0
    %668 = vmatpush1.msra.mxu0 0.0
    %669 = vmatprep.subr.mxu0 0.0
    %670 = vmatpush1.msra.mxu0 0.0
    %671 = vmatprep.subr.mxu0 0.0
    %672 = vmatpush1.msra.mxu0 0.0
    %673 = vmatprep.subr.mxu0 0.0
    %674 = vmatpush1.msra.mxu0 0.0
    %675 = vmatprep.subr.mxu0 0.0
    %676 = vmatpush1.msra.mxu0 0.0
    %677 = vmatprep.subr.mxu0 0.0
    %678 = vmatpush1.msra.mxu0 0.0
    %679 = vmatprep.subr.mxu0 0.0
    %680 = vmatpush1.msra.mxu0 0.0
    %681 = vmatprep.subr.mxu0 0.0
    %682 = vmatpush1.msra.mxu0 0.0
    %683 = vmatprep.subr.mxu0 0.0
    %684 = vmatpush1.msra.mxu0 0.0
    %685 = vmatprep.subr.mxu0 0.0
    %686 = vmatpush1.msra.mxu0 0.0
    %687 = vmatprep.subr.mxu0 0.0
    %688 = vmatpush1.msra.mxu0 0.0
    %689 = vmatprep.subr.mxu0 0.0
    %690 = vmatpush1.msra.mxu0 0.0
    %691 = vmatprep.subr.mxu0 0.0
    %692 = vmatpush1.msra.mxu0 0.0
    %693 = vmatprep.subr.mxu0 0.0
    %694 = vmatpush1.msra.mxu0 0.0
    %695 = vmatprep.subr.mxu0 0.0
    %696 = vmatpush1.msra.mxu0 0.0
    %697 = vmatprep.mubr.f32.mxu0 0.0
    %698 = vmatmul.mubr.f32.gmra.mrb[0].mxu0 %v607
    %v699 = vpop.f32.mrb[0].mxu0
    %v700 = vadd.f32 %v631, %v699
    %v701 = vpop.f32.mrb[0].mxu0
    %702 = vdwg.mxu0
    %v703 = vmax.f32 %v700, 0.0
    %v704 = vld [vmem:[#allocation4] sm:$0xff]
    %v705 = vld [vmem:[#allocation4 + $0x8] sm:$0xff]
    %v706 = vld [vmem:[#allocation4 + $0x10] sm:$0xff]
    %v707 = vld [vmem:[#allocation4 + $0x18] sm:$0xff]
    %v708 = vld [vmem:[#allocation4 + $0x20] sm:$0xff]
    %v709 = vld [vmem:[#allocation4 + $0x28] sm:$0xff]
    %v710 = vld [vmem:[#allocation4 + $0x30] sm:$0xff]
    %v711 = vld [vmem:[#allocation4 + $0x38] sm:$0xff]
    %v712 = vld [vmem:[#allocation4 + $0x40] sm:$0xff]
    %v713 = vld [vmem:[#allocation4 + $0x48] sm:$0xff]
    %v714 = vld [vmem:[#allocation4 + $0x50] sm:$0xff]
    %v715 = vld [vmem:[#allocation4 + $0x58] sm:$0xff]
    %v716 = vld [vmem:[#allocation4 + $0x60] sm:$0xff]
    %v717 = vld [vmem:[#allocation4 + $0x68] sm:$0xff]
    %v718 = vld [vmem:[#allocation4 + $0x70] sm:$0xff]
    %v719 = vld [vmem:[#allocation4 + $0x78] sm:$0xff]
    %v720 = vld [vmem:[%s8] sm:$0x1]
    %v722 = vlaneseq
    %v723 = vshrl.u32 %v722, 7
    %v724 = vsub.s32 0, %v723
    %v725 = vrot.slane %v720, %v724
    %727 = vmatprep.subr.mxu0 0.0
    %728 = vmatpush1.msra.mxu0 %v704
    %729 = vmatprep.subr.mxu0 0.0
    %730 = vmatpush1.msra.mxu0 %v705
    %731 = vmatprep.subr.mxu0 0.0
    %732 = vmatpush1.msra.mxu0 %v706
    %733 = vmatprep.subr.mxu0 0.0
    %734 = vmatpush1.msra.mxu0 %v707
    %735 = vmatprep.subr.mxu0 0.0
    %736 = vmatpush1.msra.mxu0 %v708
    %737 = vmatprep.subr.mxu0 0.0
    %738 = vmatpush1.msra.mxu0 %v709
    %739 = vmatprep.subr.mxu0 0.0
    %740 = vmatpush1.msra.mxu0 %v710
    %741 = vmatprep.subr.mxu0 0.0
    %742 = vmatpush1.msra.mxu0 %v711
    %743 = vmatprep.subr.mxu0 0.0
    %744 = vmatpush1.msra.mxu0 %v712
    %745 = vmatprep.subr.mxu0 0.0
    %746 = vmatpush1.msra.mxu0 %v713
    %747 = vmatprep.subr.mxu0 0.0
    %748 = vmatpush1.msra.mxu0 %v714
    %749 = vmatprep.subr.mxu0 0.0
    %750 = vmatpush1.msra.mxu0 %v715
    %751 = vmatprep.subr.mxu0 0.0
    %752 = vmatpush1.msra.mxu0 %v716
    %753 = vmatprep.subr.mxu0 0.0
    %754 = vmatpush1.msra.mxu0 %v717
    %755 = vmatprep.subr.mxu0 0.0
    %756 = vmatpush1.msra.mxu0 %v718
    %757 = vmatprep.subr.mxu0 0.0
    %758 = vmatpush1.msra.mxu0 %v719
    %759 = vmatprep.subr.mxu0 0.0
    %760 = vmatpush1.msra.mxu0 0.0
    %761 = vmatprep.subr.mxu0 0.0
    %762 = vmatpush1.msra.mxu0 0.0
    %763 = vmatprep.subr.mxu0 0.0
    %764 = vmatpush1.msra.mxu0 0.0
    %765 = vmatprep.subr.mxu0 0.0
    %766 = vmatpush1.msra.mxu0 0.0
    %767 = vmatprep.subr.mxu0 0.0
    %768 = vmatpush1.msra.mxu0 0.0
    %769 = vmatprep.subr.mxu0 0.0
    %770 = vmatpush1.msra.mxu0 0.0
    %771 = vmatprep.subr.mxu0 0.0
    %772 = vmatpush1.msra.mxu0 0.0
    %773 = vmatprep.subr.mxu0 0.0
    %774 = vmatpush1.msra.mxu0 0.0
    %775 = vmatprep.subr.mxu0 0.0
    %776 = vmatpush1.msra.mxu0 0.0
    %777 = vmatprep.subr.mxu0 0.0
    %778 = vmatpush1.msra.mxu0 0.0
    %779 = vmatprep.subr.mxu0 0.0
    %780 = vmatpush1.msra.mxu0 0.0
    %781 = vmatprep.subr.mxu0 0.0
    %782 = vmatpush1.msra.mxu0 0.0
    %783 = vmatprep.subr.mxu0 0.0
    %784 = vmatpush1.msra.mxu0 0.0
    %785 = vmatprep.subr.mxu0 0.0
    %786 = vmatpush1.msra.mxu0 0.0
    %787 = vmatprep.subr.mxu0 0.0
    %788 = vmatpush1.msra.mxu0 0.0
    %789 = vmatprep.subr.mxu0 0.0
    %790 = vmatpush1.msra.mxu0 0.0
    %791 = vmatprep.mubr.f32.mxu0 0.0
    %792 = vmatmul.mubr.f32.gmra.mrb[0].mxu0 %v703
    %v793 = vpop.f32.mrb[0].mxu0
    %v794 = vadd.f32 %v725, %v793
    %v795 = vpop.f32.mrb[0].mxu0
    %796 = vdwg.mxu0
    %v797 = vlaneseq
    %v798 = vshrl.u32 %v797, 7
    %v799 = vlaneseq
    %v800 = vand.u32 %v799, 127
    %v801 = vld [vmem:[%s11] sm:$0xff]
    %v802 = vmax.f32 %v794, 0.0
    %v803 = vmul.f32 %v794, %v801
    %v804 = vsub.f32 %v802, %v803
    %v805 = vand.u32 2147483647, %v794
    %v806 = vsub.f32 0.0, %v805
    %v807 = vmul.f32 %v806, 1.442695
    %v808 = vpow.pop %v807
    %v809 = vadd.f32 %v808, 1.0
    %v810 = vlog2.pop %v809
    %v811 = vmul.f32 %v810, 0.6931472
    %v812 = vadd.f32 %v804, %v811
    %vm813 = vcmp.lt.s32.totalorder %v798, 3
    %vm814 = vcmp.lt.s32.totalorder %v800, 2
    %vm815 = vmand %vm813, %vm814
    %v816 = vsel %vm815, 1, 0
    %v817 = vcvt.s32.f32 %v816
    %v818 = vmul.f32 %v812, %v817
    %819 = vadd.xlane.f32.xlu0 %v818
    %v820 = vpop.xlane.xlu0 %819
    %v821 = vrot.slane %v820, 4
    %v822 = vadd.f32 %v820, %v821
    %v823 = vrot.slane %v822, 2
    %v824 = vadd.f32 %v822, %v823
    %v825 = vrot.slane %v824, 1
    %v826 = vadd.f32 %v824, %v825
    %v827 = vrcp.pop 6.0
    %v828 = vmul.f32 %v826, %v827
    %v829 = vld [vmem:[%s10] sm:$0x1]
    %v830 = vld [vmem:[#allocation6] sm:$0xff]
    %v831 = vld [vmem:[#allocation6 + $0x8] sm:$0xff]
    %v832 = vld [vmem:[#allocation6 + $0x10] sm:$0xff]
    %v833 = vld [vmem:[#allocation6 + $0x18] sm:$0xff]
    %v834 = vld [vmem:[#allocation6 + $0x20] sm:$0xff]
    %v835 = vld [vmem:[#allocation6 + $0x28] sm:$0xff]
    %v836 = vld [vmem:[#allocation6 + $0x30] sm:$0xff]
    %v837 = vld [vmem:[#allocation6 + $0x38] sm:$0xff]
    %v838 = vld [vmem:[#allocation6 + $0x40] sm:$0xff]
    %v839 = vld [vmem:[#allocation6 + $0x48] sm:$0xff]
    %v840 = vld [vmem:[#allocation6 + $0x50] sm:$0xff]
    %v841 = vld [vmem:[#allocation6 + $0x58] sm:$0xff]
    %v842 = vld [vmem:[#allocation6 + $0x60] sm:$0xff]
    %v843 = vld [vmem:[#allocation6 + $0x68] sm:$0xff]
    %v844 = vld [vmem:[#allocation6 + $0x70] sm:$0xff]
    %v845 = vld [vmem:[#allocation6 + $0x78] sm:$0xff]
    %846 = vmatprep.subr.mxu0 0.0
    %847 = vmatpush1.msra.mxu0 %v830
    %848 = vmatprep.subr.mxu0 0.0
    %849 = vmatpush1.msra.mxu0 %v831
    %850 = vmatprep.subr.mxu0 0.0
    %851 = vmatpush1.msra.mxu0 %v832
    %852 = vmatprep.subr.mxu0 0.0
    %853 = vmatpush1.msra.mxu0 %v833
    %854 = vmatprep.subr.mxu0 0.0
    %855 = vmatpush1.msra.mxu0 %v834
    %856 = vmatprep.subr.mxu0 0.0
    %857 = vmatpush1.msra.mxu0 %v835
    %858 = vmatprep.subr.mxu0 0.0
    %859 = vmatpush1.msra.mxu0 %v836
    %860 = vmatprep.subr.mxu0 0.0
    %861 = vmatpush1.msra.mxu0 %v837
    %862 = vmatprep.subr.mxu0 0.0
    %863 = vmatpush1.msra.mxu0 %v838
    %864 = vmatprep.subr.mxu0 0.0
    %865 = vmatpush1.msra.mxu0 %v839
    %866 = vmatprep.subr.mxu0 0.0
    %867 = vmatpush1.msra.mxu0 %v840
    %868 = vmatprep.subr.mxu0 0.0
    %869 = vmatpush1.msra.mxu0 %v841
    %870 = vmatprep.subr.mxu0 0.0
    %871 = vmatpush1.msra.mxu0 %v842
    %872 = vmatprep.subr.mxu0 0.0
    %873 = vmatpush1.msra.mxu0 %v843
    %874 = vmatprep.subr.mxu0 0.0
    %875 = vmatpush1.msra.mxu0 %v844
    %876 = vmatprep.subr.mxu0 0.0
    %877 = vmatpush1.msra.mxu0 %v845
    %878 = vmatprep.subr.mxu0 0.0
    %879 = vmatpush1.msra.mxu0 0.0
    %880 = vmatprep.subr.mxu0 0.0
    %881 = vmatpush1.msra.mxu0 0.0
    %882 = vmatprep.subr.mxu0 0.0
    %883 = vmatpush1.msra.mxu0 0.0
    %884 = vmatprep.subr.mxu0 0.0
    %885 = vmatpush1.msra.mxu0 0.0
    %886 = vmatprep.subr.mxu0 0.0
    %887 = vmatpush1.msra.mxu0 0.0
    %888 = vmatprep.subr.mxu0 0.0
    %889 = vmatpush1.msra.mxu0 0.0
    %890 = vmatprep.subr.mxu0 0.0
    %891 = vmatpush1.msra.mxu0 0.0
    %892 = vmatprep.subr.mxu0 0.0
    %893 = vmatpush1.msra.mxu0 0.0
    %894 = vmatprep.subr.mxu0 0.0
    %895 = vmatpush1.msra.mxu0 0.0
    %896 = vmatprep.subr.mxu0 0.0
    %897 = vmatpush1.msra.mxu0 0.0
    %898 = vmatprep.subr.mxu0 0.0
    %899 = vmatpush1.msra.mxu0 0.0
    %900 = vmatprep.subr.mxu0 0.0
    %901 = vmatpush1.msra.mxu0 0.0
    %902 = vmatprep.subr.mxu0 0.0
    %903 = vmatpush1.msra.mxu0 0.0
    %904 = vmatprep.subr.mxu0 0.0
    %905 = vmatpush1.msra.mxu0 0.0
    %906 = vmatprep.subr.mxu0 0.0
    %907 = vmatpush1.msra.mxu0 0.0
    %908 = vmatprep.subr.mxu0 0.0
    %909 = vmatpush1.msra.mxu0 0.0
    %910 = vmatprep.mubr.f32.mxu0 0.0
    %911 = vmatmul.mubr.f32.gmra.mrb[0].mxu0 %v352
    %v912 = vpop.f32.mrb[0].mxu0
    %v913 = vadd.f32 0.0, %v912
    %v914 = vpop.f32.mrb[0].mxu0
    %915 = vdwg.mxu0
    %v917 = vlaneseq
    %v918 = vshrl.u32 %v917, 7
    %v919 = vsub.s32 0, %v918
    %v920 = vrot.slane %v829, %v919
    %v922 = vadd.f32 %v920, %v913
    %s923 = scalar_lea.vmem [#allocation6], 128
    %v924 = vld [vmem:[%s923] sm:$0xff]
    %v925 = vld [vmem:[%s923 + $0x8] sm:$0xff]
    %v926 = vld [vmem:[%s923 + $0x10] sm:$0xff]
    %v927 = vld [vmem:[%s923 + $0x18] sm:$0xff]
    %v928 = vld [vmem:[%s923 + $0x20] sm:$0xff]
    %v929 = vld [vmem:[%s923 + $0x28] sm:$0xff]
    %v930 = vld [vmem:[%s923 + $0x30] sm:$0xff]
    %v931 = vld [vmem:[%s923 + $0x38] sm:$0xff]
    %v932 = vld [vmem:[%s923 + $0x40] sm:$0xff]
    %v933 = vld [vmem:[%s923 + $0x48] sm:$0xff]
    %v934 = vld [vmem:[%s923 + $0x50] sm:$0xff]
    %v935 = vld [vmem:[%s923 + $0x58] sm:$0xff]
    %v936 = vld [vmem:[%s923 + $0x60] sm:$0xff]
    %v937 = vld [vmem:[%s923 + $0x68] sm:$0xff]
    %v938 = vld [vmem:[%s923 + $0x70] sm:$0xff]
    %v939 = vld [vmem:[%s923 + $0x78] sm:$0xff]
    %940 = vmatprep.subr.mxu0 0.0
    %941 = vmatpush1.msra.mxu0 %v924
    %942 = vmatprep.subr.mxu0 0.0
    %943 = vmatpush1.msra.mxu0 %v925
    %944 = vmatprep.subr.mxu0 0.0
    %945 = vmatpush1.msra.mxu0 %v926
    %946 = vmatprep.subr.mxu0 0.0
    %947 = vmatpush1.msra.mxu0 %v927
    %948 = vmatprep.subr.mxu0 0.0
    %949 = vmatpush1.msra.mxu0 %v928
    %950 = vmatprep.subr.mxu0 0.0
    %951 = vmatpush1.msra.mxu0 %v929
    %952 = vmatprep.subr.mxu0 0.0
    %953 = vmatpush1.msra.mxu0 %v930
    %954 = vmatprep.subr.mxu0 0.0
    %955 = vmatpush1.msra.mxu0 %v931
    %956 = vmatprep.subr.mxu0 0.0
    %957 = vmatpush1.msra.mxu0 %v932
    %958 = vmatprep.subr.mxu0 0.0
    %959 = vmatpush1.msra.mxu0 %v933
    %960 = vmatprep.subr.mxu0 0.0
    %961 = vmatpush1.msra.mxu0 %v934
    %962 = vmatprep.subr.mxu0 0.0
    %963 = vmatpush1.msra.mxu0 %v935
    %964 = vmatprep.subr.mxu0 0.0
    %965 = vmatpush1.msra.mxu0 %v936
    %966 = vmatprep.subr.mxu0 0.0
    %967 = vmatpush1.msra.mxu0 %v937
    %968 = vmatprep.subr.mxu0 0.0
    %969 = vmatpush1.msra.mxu0 %v938
    %970 = vmatprep.subr.mxu0 0.0
    %971 = vmatpush1.msra.mxu0 %v939
    %972 = vmatprep.subr.mxu0 0.0
    %973 = vmatpush1.msra.mxu0 0.0
    %974 = vmatprep.subr.mxu0 0.0
    %975 = vmatpush1.msra.mxu0 0.0
    %976 = vmatprep.subr.mxu0 0.0
    %977 = vmatpush1.msra.mxu0 0.0
    %978 = vmatprep.subr.mxu0 0.0
    %979 = vmatpush1.msra.mxu0 0.0
    %980 = vmatprep.subr.mxu0 0.0
    %981 = vmatpush1.msra.mxu0 0.0
    %982 = vmatprep.subr.mxu0 0.0
    %983 = vmatpush1.msra.mxu0 0.0
    %984 = vmatprep.subr.mxu0 0.0
    %985 = vmatpush1.msra.mxu0 0.0
    %986 = vmatprep.subr.mxu0 0.0
    %987 = vmatpush1.msra.mxu0 0.0
    %988 = vmatprep.subr.mxu0 0.0
    %989 = vmatpush1.msra.mxu0 0.0
    %990 = vmatprep.subr.mxu0 0.0
    %991 = vmatpush1.msra.mxu0 0.0
    %992 = vmatprep.subr.mxu0 0.0
    %993 = vmatpush1.msra.mxu0 0.0
    %994 = vmatprep.subr.mxu0 0.0
    %995 = vmatpush1.msra.mxu0 0.0
    %996 = vmatprep.subr.mxu0 0.0
    %997 = vmatpush1.msra.mxu0 0.0
    %998 = vmatprep.subr.mxu0 0.0
    %999 = vmatpush1.msra.mxu0 0.0
    %1000 = vmatprep.subr.mxu0 0.0
    %1001 = vmatpush1.msra.mxu0 0.0
    %1002 = vmatprep.subr.mxu0 0.0
    %1003 = vmatpush1.msra.mxu0 0.0
    %1004 = vmatprep.mubr.f32.mxu0 0.0
    %1005 = vmatmul.mubr.f32.gmra.mrb[0].mxu0 %v607
    %v1006 = vpop.f32.mrb[0].mxu0
    %v1007 = vadd.f32 0.0, %v1006
    %v1008 = vpop.f32.mrb[0].mxu0
    %1009 = vdwg.mxu0
    %v1010 = vadd.f32 %v922, %v1007
    %s1011 = scalar_lea.vmem [#allocation6], 256
    %v1012 = vld [vmem:[%s1011] sm:$0xff]
    %v1013 = vld [vmem:[%s1011 + $0x8] sm:$0xff]
    %v1014 = vld [vmem:[%s1011 + $0x10] sm:$0xff]
    %v1015 = vld [vmem:[%s1011 + $0x18] sm:$0xff]
    %v1016 = vld [vmem:[%s1011 + $0x20] sm:$0xff]
    %v1017 = vld [vmem:[%s1011 + $0x28] sm:$0xff]
    %v1018 = vld [vmem:[%s1011 + $0x30] sm:$0xff]
    %v1019 = vld [vmem:[%s1011 + $0x38] sm:$0xff]
    %v1020 = vld [vmem:[%s1011 + $0x40] sm:$0xff]
    %v1021 = vld [vmem:[%s1011 + $0x48] sm:$0xff]
    %v1022 = vld [vmem:[%s1011 + $0x50] sm:$0xff]
    %v1023 = vld [vmem:[%s1011 + $0x58] sm:$0xff]
    %v1024 = vld [vmem:[%s1011 + $0x60] sm:$0xff]
    %v1025 = vld [vmem:[%s1011 + $0x68] sm:$0xff]
    %v1026 = vld [vmem:[%s1011 + $0x70] sm:$0xff]
    %v1027 = vld [vmem:[%s1011 + $0x78] sm:$0xff]
    %1028 = vmatprep.subr.mxu0 0.0
    %1029 = vmatpush1.msra.mxu0 %v1012
    %1030 = vmatprep.subr.mxu0 0.0
    %1031 = vmatpush1.msra.mxu0 %v1013
    %1032 = vmatprep.subr.mxu0 0.0
    %1033 = vmatpush1.msra.mxu0 %v1014
    %1034 = vmatprep.subr.mxu0 0.0
    %1035 = vmatpush1.msra.mxu0 %v1015
    %1036 = vmatprep.subr.mxu0 0.0
    %1037 = vmatpush1.msra.mxu0 %v1016
    %1038 = vmatprep.subr.mxu0 0.0
    %1039 = vmatpush1.msra.mxu0 %v1017
    %1040 = vmatprep.subr.mxu0 0.0
    %1041 = vmatpush1.msra.mxu0 %v1018
    %1042 = vmatprep.subr.mxu0 0.0
    %1043 = vmatpush1.msra.mxu0 %v1019
    %1044 = vmatprep.subr.mxu0 0.0
    %1045 = vmatpush1.msra.mxu0 %v1020
    %1046 = vmatprep.subr.mxu0 0.0
    %1047 = vmatpush1.msra.mxu0 %v1021
    %1048 = vmatprep.subr.mxu0 0.0
    %1049 = vmatpush1.msra.mxu0 %v1022
    %1050 = vmatprep.subr.mxu0 0.0
    %1051 = vmatpush1.msra.mxu0 %v1023
    %1052 = vmatprep.subr.mxu0 0.0
    %1053 = vmatpush1.msra.mxu0 %v1024
    %1054 = vmatprep.subr.mxu0 0.0
    %1055 = vmatpush1.msra.mxu0 %v1025
    %1056 = vmatprep.subr.mxu0 0.0
    %1057 = vmatpush1.msra.mxu0 %v1026
    %1058 = vmatprep.subr.mxu0 0.0
    %1059 = vmatpush1.msra.mxu0 %v1027
    %1060 = vmatprep.subr.mxu0 0.0
    %1061 = vmatpush1.msra.mxu0 0.0
    %1062 = vmatprep.subr.mxu0 0.0
    %1063 = vmatpush1.msra.mxu0 0.0
    %1064 = vmatprep.subr.mxu0 0.0
    %1065 = vmatpush1.msra.mxu0 0.0
    %1066 = vmatprep.subr.mxu0 0.0
    %1067 = vmatpush1.msra.mxu0 0.0
    %1068 = vmatprep.subr.mxu0 0.0
    %1069 = vmatpush1.msra.mxu0 0.0
    %1070 = vmatprep.subr.mxu0 0.0
    %1071 = vmatpush1.msra.mxu0 0.0
    %1072 = vmatprep.subr.mxu0 0.0
    %1073 = vmatpush1.msra.mxu0 0.0
    %1074 = vmatprep.subr.mxu0 0.0
    %1075 = vmatpush1.msra.mxu0 0.0
    %1076 = vmatprep.subr.mxu0 0.0
    %1077 = vmatpush1.msra.mxu0 0.0
    %1078 = vmatprep.subr.mxu0 0.0
    %1079 = vmatpush1.msra.mxu0 0.0
    %1080 = vmatprep.subr.mxu0 0.0
    %1081 = vmatpush1.msra.mxu0 0.0
    %1082 = vmatprep.subr.mxu0 0.0
    %1083 = vmatpush1.msra.mxu0 0.0
    %1084 = vmatprep.subr.mxu0 0.0
    %1085 = vmatpush1.msra.mxu0 0.0
    %1086 = vmatprep.subr.mxu0 0.0
    %1087 = vmatpush1.msra.mxu0 0.0
    %1088 = vmatprep.subr.mxu0 0.0
    %1089 = vmatpush1.msra.mxu0 0.0
    %1090 = vmatprep.subr.mxu0 0.0
    %1091 = vmatpush1.msra.mxu0 0.0
    %1092 = vmatprep.mubr.f32.mxu0 0.0
    %1093 = vmatmul.mubr.f32.gmra.mrb[0].mxu0 %v794
    %v1094 = vpop.f32.mrb[0].mxu0
    %v1095 = vadd.f32 0.0, %v1094
    %v1096 = vpop.f32.mrb[0].mxu0
    %1097 = vdwg.mxu0
    %v1098 = vadd.f32 %v1010, %v1095
    %v1099 = vsel %vm814, %v1098, -1e+30
    %1100 = vmax.xlane.f32.xlu0 %v1099
    %v1101 = vpop.xlane.xlu0 %1100
    %v1102 = vsub.f32 %v1099, %v1101
    %v1103 = vmul.f32 %v1102, 1.442695
    %v1104 = vpow.pop %v1103
    %1105 = vadd.xlane.f32.xlu0 %v1104
    %v1106 = vpop.xlane.xlu0 %1105
    %v1107 = vlog2.pop %v1106
    %v1108 = vmul.f32 %v1107, 0.6931472
    %v1109 = vadd.f32 %v1101, %v1108
    %1111 = vrot.lane.b32.xlu0 %v1098, 127
    %v1112 = vpop.permute.xlu0 %1111
    %v1114 = vsel %vm813, %v1098, %v1112
    %vm1115 = vcmp.lt.s32.totalorder %v798, 6
    %v1116 = vsel %vm1115, 1, 0
    %v1117 = vcvt.s32.f32 %v1116
    %v1118 = vsub.f32 %v1109, %v1114
    %v1119 = vmul.f32 %v1118, %v1117
    %vm1120 = vcmask 7168
    %v1121 = vsel %vm1120, %v1119, 0.0
    %v1122 = vrot.slane %v1121, 4
    %v1123 = vadd.f32 %v1121, %v1122
    %v1124 = vrot.slane %v1123, 2
    %v1125 = vadd.f32 %v1123, %v1124
    %v1126 = vrot.slane %v1125, 1
    %v1127 = vadd.f32 %v1125, %v1126
    %v1128 = vmul.f32 %v1127, %v827
    %vm1129 = vcmp.eq.s32.totalorder %v800, 0
    %vm1130 = vcmp.eq.s32.totalorder %v800, 1
    %1132 = vset.pattern.permute.xlu0 0
    %1133 = vperm.xlu0 %1132, %v1128
    %v1134 = vpop.permute.xlu0 %1133
    %v1136 = vsel %vm1130, %v1134, 0.0
    %v1137 = vsel %vm1129, %v828, %v1136
    %1138 = vst [vmem:[%s12] sm:$0x1] %v1137
    // Predicated region
    $region62: #{grade_gc_forward.1} parent=1 // pred_check
      _
    $region63: #{grade_gc_forward.1} parent=1 // pred_check_branch
      %1140 = sbr.rel (0) target = $region65
    $region64: #{grade_gc_forward.1} parent=1 // pred_region
      _
    $region65: #{grade_gc_forward.1} parent=1 // pred_fallthru
      _
    // Predicated region
    $region66: #{grade_gc_forward.1} parent=1 // pred_check
      _
    $region67: #{grade_gc_forward.1} parent=1 // pred_check_branch
      %1142 = sbr.rel (0) target = $region69
    $region68: #{grade_gc_forward.1} parent=1 // pred_region
      _
    $region69: #{grade_gc_forward.1} parent=1 // pred_fallthru
      _
    %1143 = vsyncpa [#allocation3], 1
    %1144 = vsyncpa [#allocation5], 1

</llo_original>
